<compile_context>
chip_gen: v6e
topology: v6e:2x2x1
jax: 0.10.0
libtpu: 0.0.40
codegen_flags: <defaults>
</compile_context>

<pallas_src>
import functools

import numpy as np

import jax
import jax.numpy as jnp
from jax import lax
from jax.experimental import pallas as pl
from jax.experimental.pallas import tpu as pltpu


def _vmem_limit_bytes():
    try:
        cap = int(pltpu.get_tpu_info().vmem_capacity_bytes)
        return min(cap * 3 // 4, 100 * 1024 * 1024)   # 48 MiB on v7x, 96 MiB on v5e/v6e
    except Exception:
        return 48 * 1024 * 1024                        # safe on every generation


_VMEM_LIMIT_BYTES = _vmem_limit_bytes()


def _compiler_params(n_grid_dims):
    return pltpu.CompilerParams(
        dimension_semantics=("parallel",) * n_grid_dims,
        vmem_limit_bytes=_VMEM_LIMIT_BYTES)


def _pick_tile(total, target, quantum):
    """Largest divisor of `total` <= target that is a multiple of `quantum`.

    Falls back to `total` (full extent), so the chosen block dim is always
    either a multiple of `quantum` or equal to the full array dim.
    """
    if total <= target:
        return total
    for cand in range(target, 0, -1):
        if total % cand == 0 and cand % quantum == 0:
            return cand
    return total


def _choose_frames(D, HW, Cin, Cout, budget_bytes):
    """Frames per spatial-conv block: F | D, lane extent F*HW 128-aligned
    (or F == D), block working set within the VMEM budget."""
    fallback = D
    for F in range(D, 0, -1):
        if D % F:
            continue
        if F != D and (F * HW) % 128:
            continue
        fallback = F
        L = F * HW
        # rough bytes: x in (f32, dbl-buf) + 9 f32 pieces + f32/bf16 xs
        # + f32 y + bf16 y out (dbl-buf) + masks
        est = L * (Cin * (8 + 36 + 4 + 2) + Cout * (4 + 4) + 36)
        if est <= budget_bytes:
            return F
    return fallback


def _spatial_masks(H, W, F):
    """(9, F*HW) 1.0/0.0 validity masks for the 3x3 taps (trace-time constants)."""
    HW = H * W
    hw = np.arange(HW)
    h = hw // W
    w = hw % W
    masks = np.zeros((9, HW), np.float32)
    k = 0
    for dh in (-1, 0, 1):
        for dw in (-1, 0, 1):
            valid = ((h + dh >= 0) & (h + dh < H) &
                     (w + dw >= 0) & (w + dw < W))
            masks[k] = valid.astype(np.float32)
            k += 1
    return jnp.asarray(np.tile(masks, (1, F)))


def _temporal_masks(D, HW):
    """(2, D*HW): [0] zeros frame 0 (no d-1), [1] zeros frame D-1 (no d+1)."""
    m = np.ones((2, D * HW), np.float32)
    m[0, :HW] = 0.0
    m[1, (D - 1) * HW:] = 0.0
    return jnp.asarray(m)


# ---------------------------------------------------------------------------
# Pallas kernels
# ---------------------------------------------------------------------------

def _spatial_conv_kernel(m_ref, x_ref, w_ref, y_ref, st_ref, *, W):
    """1x3x3 conv (padding (1,1)) over a slab of F frames + block BN stats.

    m_ref : (9, L)        f32   per-tap validity masks, L = F*HW (frame-major)
    x_ref : (Cin, L)      f32   input slab, frames flattened into the lane dim
    w_ref : (Cout, 9*Cin) bf16  fused weights, tap-major contraction rows
    y_ref : (Cout, L)     bf16  conv output slab
    st_ref: (Cout, 2)     f32   [:, 0] = sum, [:, 1] = sum of squares
    """
    L = x_ref.shape[1]
    xb = x_ref[...]                       # (Cin, L) f32
    m = m_ref[...]                        # (9, L)   f32
    wf = w_ref[...]                       # (Cout, 9*Cin) bf16

    pieces = []
    k = 0
    for dh in (-1, 0, 1):
        for dw in (-1, 0, 1):
            if dh == 0 and dw == 0:
                pieces.append(xb)
            else:
                shift = (-(dh * W + dw)) % L
                # Rolling over the whole slab is safe: every cross-frame /
                # cross-slab wrap position is exactly a masked boundary pixel.
                pieces.append(pltpu.roll(xb, shift=shift, axis=1) * m[k:k + 1, :])
            k += 1
    # single fused matmul: K = 9*Cin, N = F*HW (frames batched into N)
    xs = jnp.concatenate(pieces, axis=0).astype(wf.dtype)        # (9*Cin, L)
    yf = jnp.dot(wf, xs, preferred_element_type=jnp.float32)     # (Cout, L) f32
    y_ref[...] = yf.astype(y_ref.dtype)
    s = jnp.sum(yf, axis=1, keepdims=True)
    q = jnp.sum(yf * yf, axis=1, keepdims=True)
    st_ref[...] = jnp.concatenate([s, q], axis=1)


def _temporal_conv_kernel(m_ref, y_ref, w_ref, s1_ref, b1_ref, o_ref, st_ref, *, HW):
    """Fused BN1 affine + ReLU, then 3x1x1 conv (padding 1) + block BN stats.

    m_ref : (2, L)    f32  frame-boundary masks, L = D*HW (frame-major)
    y_ref : (C, L)    bf16 conv1 output for one sample
    w_ref : (3, C, C) bf16 per-tap temporal weights (kt, co, ci)
    s1_ref, b1_ref : (C, 1) f32 folded BN1 scale / bias
    o_ref : (C, L)    bf16 conv2 output
    st_ref: (C, 2)    f32  [:, 0] = sum, [:, 1] = sum of squares
    """
    L = o_ref.shape[1]
    cd = w_ref.dtype
    m = m_ref[...]
    # BN1 + ReLU prologue in f32 (stats precision), operands cast at the dots.
    a = jnp.maximum(y_ref[...].astype(jnp.float32) * s1_ref[...] + b1_ref[...], 0.0)
    a_prev = pltpu.roll(a, shift=HW, axis=1) * m[0:1, :]            # in[d-1]
    a_next = pltpu.roll(a, shift=(L - HW) % L, axis=1) * m[1:2, :]  # in[d+1]
    # three full-width matmuls: K = C, N = D*HW (no per-d operand rebuild)
    o = jnp.dot(w_ref[1], a.astype(cd), preferred_element_type=jnp.float32)
    o = o + jnp.dot(w_ref[0], a_prev.astype(cd), preferred_element_type=jnp.float32)
    o = o + jnp.dot(w_ref[2], a_next.astype(cd), preferred_element_type=jnp.float32)
    o_ref[...] = o.astype(o_ref.dtype)
    s = jnp.sum(o, axis=1, keepdims=True)
    q = jnp.sum(o * o, axis=1, keepdims=True)
    st_ref[...] = jnp.concatenate([s, q], axis=1)


def _bn_relu_kernel(x_ref, s_ref, b_ref, o_ref):
    """Per-row affine (folded BN2) + ReLU.  x_ref: (rb, lb) bf16, s/b: (rb, 1) f32."""
    x = x_ref[...].astype(jnp.float32)
    o_ref[...] = jnp.maximum(x * s_ref[...] + b_ref[...], 0.0).astype(o_ref.dtype)


# ---------------------------------------------------------------------------
# pallas_call wrappers
# ---------------------------------------------------------------------------

def spatial_conv_stats(x_r, w1f, masks, W, F, HW):
    """x_r: (N, Cin, D*HW) f32, w1f: (Cout, 9*Cin) bf16 -> (y1 bf16, stats f32)."""
    N, Cin, DHW = x_r.shape
    Cout = w1f.shape[0]
    L = F * HW
    DB = DHW // L
    kernel = functools.partial(_spatial_conv_kernel, W=W)
    return pl.pallas_call(
        kernel,
        out_shape=(
            jax.ShapeDtypeStruct((N, Cout, DHW), w1f.dtype),
            jax.ShapeDtypeStruct((N, DB, Cout, 2), jnp.float32),
        ),
        grid=(N, DB),   # batch first: keeps both v7x TensorCores busy for N >= 2
        in_specs=[
            pl.BlockSpec((9, L), lambda n, d: (0, 0)),
            pl.BlockSpec((None, Cin, L), lambda n, d: (n, 0, d)),
            pl.BlockSpec((Cout, 9 * Cin), lambda n, d: (0, 0)),
        ],
        out_specs=(
            pl.BlockSpec((None, Cout, L), lambda n, d: (n, 0, d)),
            pl.BlockSpec((None, None, Cout, 2), lambda n, d: (n, d, 0, 0)),
        ),
        compiler_params=_compiler_params(2),
    )(masks, x_r, w1f)


def temporal_conv_stats(y1, w2t, scale1, bias1, tmask, HW):
    """y1: (N, C, D*HW) bf16, w2t: (3, C, C) bf16, scale1/bias1: (C, 1) f32."""
    N, C, DHW = y1.shape
    kernel = functools.partial(_temporal_conv_kernel, HW=HW)
    # TODO(synk): for very large C*D*HW activations this per-sample block should
    # be tiled over frame chunks with a 1-frame halo to respect v7x's 64 MiB VMEM.
    return pl.pallas_call(
        kernel,
        out_shape=(
            jax.ShapeDtypeStruct((N, C, DHW), y1.dtype),
            jax.ShapeDtypeStruct((N, C, 2), jnp.float32),
        ),
        grid=(N,),
        in_specs=[
            pl.BlockSpec((2, DHW), lambda n: (0, 0)),
            pl.BlockSpec((None, C, DHW), lambda n: (n, 0, 0)),
            pl.BlockSpec((3, C, C), lambda n: (0, 0, 0)),
            pl.BlockSpec((C, 1), lambda n: (0, 0)),
            pl.BlockSpec((C, 1), lambda n: (0, 0)),
        ],
        out_specs=(
            pl.BlockSpec((None, C, DHW), lambda n: (n, 0, 0)),
            pl.BlockSpec((None, C, 2), lambda n: (n, 0, 0)),
        ),
        compiler_params=_compiler_params(1),
    )(tmask, y1, w2t, scale1, bias1)


def bn_relu_rows(x2, s_rows, b_rows):
    """x2: (R, L) bf16 with per-row f32 scale/bias (R, 1); lane-dense tiled; f32 out."""
    R, L = x2.shape
    rb = _pick_tile(R, 256, 8)
    lb = _pick_tile(L, 4096, 128)
    return pl.pallas_call(
        _bn_relu_kernel,
        out_shape=jax.ShapeDtypeStruct((R, L), jnp.float32),
        grid=(R // rb, L // lb),
        in_specs=[
            pl.BlockSpec((rb, lb), lambda i, j: (i, j)),
            pl.BlockSpec((rb, 1), lambda i, j: (i, 0)),
            pl.BlockSpec((rb, 1), lambda i, j: (i, 0)),
        ],
        out_specs=pl.BlockSpec((rb, lb), lambda i, j: (i, j)),
        compiler_params=_compiler_params(2),
    )(x2, s_rows, b_rows)


# ---------------------------------------------------------------------------
# Module
# ---------------------------------------------------------------------------

class BasicSTConv3dPallas:
    """Pallas re-implementation of BasicSTConv3d (stride=1, train-mode BN)."""

    def __init__(self, in_planes, out_planes, stride=1, key=None,
                 compute_dtype=jnp.bfloat16):
        assert stride == 1  # TODO(synk): strided (1,s,s)/(s,1,1) paths not implemented
        self.in_planes = in_planes
        self.out_planes = out_planes
        self.eps = 1e-3
        self.compute_dtype = compute_dtype
        if key is None:
            key = jax.random.PRNGKey(0)
        k = jax.random.split(key, 6)
        # PyTorch weight shapes: conv1 (O, I, 1, 3, 3); conv2 (O, O, 3, 1, 1)
        self.w1_torch = 0.1 * jax.random.normal(
            k[0], (out_planes, in_planes, 1, 3, 3), jnp.float32)
        self.w2_torch = 0.1 * jax.random.normal(
            k[1], (out_planes, out_planes, 3, 1, 1), jnp.float32)
        # Fused kernel layouts (bf16 MXU operands):
        #   w1f[co, (kh*3+kw)*Cin + ci] = w1_torch[co, ci, 0, kh, kw]
        #   w2t[kt, co, ci]             = w2_torch[co, ci, kt, 0, 0]
        self.w1f = jnp.transpose(self.w1_torch[:, :, 0], (0, 2, 3, 1)) \
                      .reshape(out_planes, 9 * in_planes).astype(compute_dtype)
        self.w2t = jnp.transpose(self.w2_torch[:, :, :, 0, 0], (2, 0, 1)) \
                      .astype(compute_dtype)
        self.gamma1 = 1.0 + 0.1 * jax.random.normal(k[2], (out_planes,), jnp.float32)
        self.beta1 = 0.1 * jax.random.normal(k[3], (out_planes,), jnp.float32)
        self.gamma2 = 1.0 + 0.1 * jax.random.normal(k[4], (out_planes,), jnp.float32)
        self.beta2 = 0.1 * jax.random.normal(k[5], (out_planes,), jnp.float32)
        # TODO(synk): BatchNorm running-mean/var (momentum) updates are host-side
        # state and do not affect the forward output; not implemented.

    def __call__(self, x):
        # x: (N, Cin, D, H, W) float32 (PyTorch NCDHW)
        N, Cin, D, H, W = x.shape
        assert Cin == self.in_planes
        HW = H * W
        C = self.out_planes
        eps = self.eps

        # Only free dim-merge reshapes (no transposes): NCDHW -> (N, Cin, D*HW)
        x_r = x.reshape(N, Cin, D * HW)
        F = _choose_frames(D, HW, Cin, C, _VMEM_LIMIT_BYTES // 2)
        masks = _spatial_masks(H, W, F)

        # --- conv1 (1x3x3) + per-block BN1 stats (stats in f32, y1 stored bf16) ---
        y1, st1 = spatial_conv_stats(x_r, self.w1f, masks, W, F, HW)

        cnt = float(N * D * HW)
        mean1 = jnp.sum(st1[..., 0], axis=(0, 1)) / cnt
        var1 = jnp.sum(st1[..., 1], axis=(0, 1)) / cnt - mean1 * mean1  # biased (train BN)
        scale1 = self.gamma1 * lax.rsqrt(var1 + eps)
        bias1 = self.beta1 - mean1 * scale1

        # --- BN1+ReLU fused into conv2 (3x1x1) prologue, + per-block BN2 stats ---
        tmask = _temporal_masks(D, HW)
        y2, st2 = temporal_conv_stats(y1, self.w2t, scale1.reshape(C, 1),
                                      bias1.reshape(C, 1), tmask, HW)

        mean2 = jnp.sum(st2[..., 0], axis=0) / cnt
        var2 = jnp.sum(st2[..., 1], axis=0) / cnt - mean2 * mean2
        scale2 = self.gamma2 * lax.rsqrt(var2 + eps)
        bias2 = self.beta2 - mean2 * scale2

        # --- BN2 + ReLU (lane-dense elementwise pass over bf16 y2) ---
        y2_rows = y2.reshape(N * C, D * HW)                  # free merge
        s_rows = jnp.tile(scale2, N).reshape(N * C, 1)
        b_rows = jnp.tile(bias2, N).reshape(N * C, 1)
        out = bn_relu_rows(y2_rows, s_rows, b_rows)

        return out.reshape(N, C, D, H, W)                    # already NCDHW


# ---------------------------------------------------------------------------
# Pure-JAX reference (rounds exactly where the kernel rounds, f32 accumulate)
# ---------------------------------------------------------------------------

def reference_forward(x, mod: BasicSTConv3dPallas):
    dn = ("NCDHW", "OIDHW", "NCDHW")
    eps = mod.eps
    cd = mod.compute_dtype

    def cast(a):  # bf16 MXU operands / bf16 HBM intermediates, as in the kernels
        return a.astype(cd).astype(jnp.float32)

    def bn_stats(y):
        mean = jnp.mean(y, axis=(0, 2, 3, 4))
        var = jnp.mean(y * y, axis=(0, 2, 3, 4)) - mean * mean
        return mean, var

    y1 = lax.conv_general_dilated(cast(x), cast(mod.w1_torch), (1, 1, 1),
                                  [(0, 0), (1, 1), (1, 1)], dimension_numbers=dn)
    m1, v1 = bn_stats(y1)                      # stats from f32 y1 (as in kernel)
    s1 = mod.gamma1 * lax.rsqrt(v1 + eps)
    b1 = mod.beta1 - m1 * s1
    a = jnp.maximum(cast(y1) * s1.reshape(1, -1, 1, 1, 1)
                    + b1.reshape(1, -1, 1, 1, 1), 0.0)

    y2 = lax.conv_general_dilated(cast(a), cast(mod.w2_torch), (1, 1, 1),
                                  [(1, 1), (0, 0), (0, 0)], dimension_numbers=dn)
    m2, v2 = bn_stats(y2)
    s2 = mod.gamma2 * lax.rsqrt(v2 + eps)
    b2 = mod.beta2 - m2 * s2
    return jnp.maximum(cast(y2) * s2.reshape(1, -1, 1, 1, 1)
                       + b2.reshape(1, -1, 1, 1, 1), 0.0)


# ---------------------------------------------------------------------------
# Main
# ---------------------------------------------------------------------------

if __name__ == "__main__":
    key = jax.random.PRNGKey(0)
    k_x, k_p = jax.random.split(key)

    N, Cin, D, H, W = 2, 4, 8, 16, 16
    Cout = 8
    x = jax.random.normal(k_x, (N, Cin, D, H, W), jnp.float32)

    mod = BasicSTConv3dPallas(Cin, Cout, stride=1, key=k_p)

    out = jax.block_until_ready(mod(x))
    ref = jax.block_until_ready(reference_forward(x, mod))

    assert out.shape == (N, Cout, D, H, W), out.shape
    # 1e-2: both paths round through bf16 at the same points; residual error is
    # f32 accumulation-order noise plus rare one-ulp bf16 rounding straddles.
    max_err = float(jnp.max(jnp.abs(out - ref)))
    assert max_err < 1e-2, f"max abs error {max_err}"

    print("KERNEL_OK")
</pallas_src>

<mosaic_0001>
module attributes {stable_mosaic.version = 11 : i64} {
  func.func @_spatial_conv_kernel(%arg0: i32, %arg1: i32, %arg2: memref<9x2048xf32, #tpu.memory_space<vmem>>, %arg3: memref<1x4x2048xf32, #tpu.memory_space<vmem>>, %arg4: memref<8x36xbf16, #tpu.memory_space<vmem>>, %arg5: memref<1x8x2048xbf16, #tpu.memory_space<vmem>>, %arg6: memref<1x1x8x2xf32, #tpu.memory_space<vmem>>) attributes {dimension_semantics = [#tpu.dimension_semantics<parallel>, #tpu.dimension_semantics<parallel>], iteration_bounds = array<i64: 2, 1>, scalar_prefetch = 0 : i64, scratch_operands = 0 : i64, tpu.core_type = #tpu.core_type<tc>, window_params = [{pipeline_mode = #tpu.pipeline_mode<synchronous>, transform_indices = @transform_0, window_bounds = array<i64: 9, 2048>}, {transform_indices = @transform_1, window_bounds = array<i64: 1, 4, 2048>}, {pipeline_mode = #tpu.pipeline_mode<synchronous>, transform_indices = @transform_2, window_bounds = array<i64: 8, 36>}, {transform_indices = @transform_3, window_bounds = array<i64: 1, 8, 2048>}, {transform_indices = @transform_4, window_bounds = array<i64: 1, 1, 8, 2>}]} {
    %c0 = arith.constant 0 : index
    %c0_0 = arith.constant 0 : index
    %c0_1 = arith.constant 0 : index
    %0 = vector.load %arg3[%c0, %c0_0, %c0_1] : memref<1x4x2048xf32, #tpu.memory_space<vmem>>, vector<1x4x2048xf32>
    %1 = vector.shape_cast %0 : vector<1x4x2048xf32> to vector<4x2048xf32>
    %c0_2 = arith.constant 0 : index
    %c0_3 = arith.constant 0 : index
    %2 = vector.load %arg2[%c0_2, %c0_3] : memref<9x2048xf32, #tpu.memory_space<vmem>>, vector<9x2048xf32>
    %c0_4 = arith.constant 0 : index
    %c0_5 = arith.constant 0 : index
    %3 = vector.load %arg4[%c0_4, %c0_5] : memref<8x36xbf16, #tpu.memory_space<vmem>>, vector<8x36xbf16>
    %c17_i32 = arith.constant 17 : i32
    %4 = tpu.dynamic_rotate %1 by %c17_i32 dim 1 : vector<4x2048xf32>, i32 -> vector<4x2048xf32>
    %5 = vector.extract_strided_slice %2 {offsets = [0, 0], sizes = [1, 2048], strides = [1, 1]} : vector<9x2048xf32> to vector<1x2048xf32>
    %6 = vector.broadcast %5 : vector<1x2048xf32> to vector<4x2048xf32>
    %7 = arith.mulf %4, %6 : vector<4x2048xf32>
    %c16_i32 = arith.constant 16 : i32
    %8 = tpu.dynamic_rotate %1 by %c16_i32 dim 1 : vector<4x2048xf32>, i32 -> vector<4x2048xf32>
    %9 = vector.extract_strided_slice %2 {offsets = [1, 0], sizes = [1, 2048], strides = [1, 1]} : vector<9x2048xf32> to vector<1x2048xf32>
    %10 = vector.broadcast %9 : vector<1x2048xf32> to vector<4x2048xf32>
    %11 = arith.mulf %8, %10 : vector<4x2048xf32>
    %c15_i32 = arith.constant 15 : i32
    %12 = tpu.dynamic_rotate %1 by %c15_i32 dim 1 : vector<4x2048xf32>, i32 -> vector<4x2048xf32>
    %13 = vector.extract_strided_slice %2 {offsets = [2, 0], sizes = [1, 2048], strides = [1, 1]} : vector<9x2048xf32> to vector<1x2048xf32>
    %14 = vector.broadcast %13 : vector<1x2048xf32> to vector<4x2048xf32>
    %15 = arith.mulf %12, %14 : vector<4x2048xf32>
    %c1_i32 = arith.constant 1 : i32
    %16 = tpu.dynamic_rotate %1 by %c1_i32 dim 1 : vector<4x2048xf32>, i32 -> vector<4x2048xf32>
    %17 = vector.extract_strided_slice %2 {offsets = [3, 0], sizes = [1, 2048], strides = [1, 1]} : vector<9x2048xf32> to vector<1x2048xf32>
    %18 = vector.broadcast %17 : vector<1x2048xf32> to vector<4x2048xf32>
    %19 = arith.mulf %16, %18 : vector<4x2048xf32>
    %c2047_i32 = arith.constant 2047 : i32
    %20 = tpu.dynamic_rotate %1 by %c2047_i32 dim 1 : vector<4x2048xf32>, i32 -> vector<4x2048xf32>
    %21 = vector.extract_strided_slice %2 {offsets = [5, 0], sizes = [1, 2048], strides = [1, 1]} : vector<9x2048xf32> to vector<1x2048xf32>
    %22 = vector.broadcast %21 : vector<1x2048xf32> to vector<4x2048xf32>
    %23 = arith.mulf %20, %22 : vector<4x2048xf32>
    %c2033_i32 = arith.constant 2033 : i32
    %24 = tpu.dynamic_rotate %1 by %c2033_i32 dim 1 : vector<4x2048xf32>, i32 -> vector<4x2048xf32>
    %25 = vector.extract_strided_slice %2 {offsets = [6, 0], sizes = [1, 2048], strides = [1, 1]} : vector<9x2048xf32> to vector<1x2048xf32>
    %26 = vector.broadcast %25 : vector<1x2048xf32> to vector<4x2048xf32>
    %27 = arith.mulf %24, %26 : vector<4x2048xf32>
    %c2032_i32 = arith.constant 2032 : i32
    %28 = tpu.dynamic_rotate %1 by %c2032_i32 dim 1 : vector<4x2048xf32>, i32 -> vector<4x2048xf32>
    %29 = vector.extract_strided_slice %2 {offsets = [7, 0], sizes = [1, 2048], strides = [1, 1]} : vector<9x2048xf32> to vector<1x2048xf32>
    %30 = vector.broadcast %29 : vector<1x2048xf32> to vector<4x2048xf32>
    %31 = arith.mulf %28, %30 : vector<4x2048xf32>
    %c2031_i32 = arith.constant 2031 : i32
    %32 = tpu.dynamic_rotate %1 by %c2031_i32 dim 1 : vector<4x2048xf32>, i32 -> vector<4x2048xf32>
    %33 = vector.extract_strided_slice %2 {offsets = [8, 0], sizes = [1, 2048], strides = [1, 1]} : vector<9x2048xf32> to vector<1x2048xf32>
    %34 = vector.broadcast %33 : vector<1x2048xf32> to vector<4x2048xf32>
    %35 = arith.mulf %32, %34 : vector<4x2048xf32>
    %36 = tpu.concatenate %7, %11, %15, %19, %1, %23, %27, %31, %35 in 0 : vector<4x2048xf32>, vector<4x2048xf32>, vector<4x2048xf32>, vector<4x2048xf32>, vector<4x2048xf32>, vector<4x2048xf32>, vector<4x2048xf32>, vector<4x2048xf32>, vector<4x2048xf32> -> vector<36x2048xf32>
    %37 = arith.truncf %36 : vector<36x2048xf32> to vector<36x2048xbf16>
    %cst = arith.constant dense<0.000000e+00> : vector<8x2048xf32>
    %38 = tpu.matmul %3, %37, %cst {dimension_numbers = #tpu.dot_dimension_numbers<[1], [0], [0], [1], [0, 0, 1, 1], [], []>} : vector<8x36xbf16>, vector<36x2048xbf16>, vector<8x2048xf32> -> vector<8x2048xf32>
    %39 = arith.truncf %38 : vector<8x2048xf32> to vector<8x2048xbf16>
    %c0_6 = arith.constant 0 : index
    %c0_7 = arith.constant 0 : index
    %c0_8 = arith.constant 0 : index
    %40 = vector.load %arg5[%c0_6, %c0_7, %c0_8] : memref<1x8x2048xbf16, #tpu.memory_space<vmem>>, vector<1x8x2048xbf16>
    %41 = vector.shape_cast %40 : vector<1x8x2048xbf16> to vector<8x2048xbf16>
    %42 = vector.shape_cast %39 : vector<8x2048xbf16> to vector<1x8x2048xbf16>
    tpu.vector_store %arg5[%c0_6, %c0_7, %c0_8], %42 {strides = array<i32>} : memref<1x8x2048xbf16, #tpu.memory_space<vmem>>, vector<1x8x2048xbf16>,
    %cst_9 = arith.constant dense<0.000000e+00> : vector<8xf32>
    %43 = vector.multi_reduction <add>, %38, %cst_9 [1] : vector<8x2048xf32> to vector<8xf32>
    %44 = vector.shape_cast %43 : vector<8xf32> to vector<8x1xf32>
    %45 = arith.mulf %38, %38 : vector<8x2048xf32>
    %cst_10 = arith.constant dense<0.000000e+00> : vector<8xf32>
    %46 = vector.multi_reduction <add>, %45, %cst_10 [1] : vector<8x2048xf32> to vector<8xf32>
    %47 = vector.shape_cast %46 : vector<8xf32> to vector<8x1xf32>
    %48 = tpu.concatenate %44, %47 in 1 : vector<8x1xf32>, vector<8x1xf32> -> vector<8x2xf32>
    %c0_11 = arith.constant 0 : index
    %c0_12 = arith.constant 0 : index
    %c0_13 = arith.constant 0 : index
    %c0_14 = arith.constant 0 : index
    %49 = vector.load %arg6[%c0_11, %c0_12, %c0_13, %c0_14] : memref<1x1x8x2xf32, #tpu.memory_space<vmem>>, vector<1x1x8x2xf32>
    %50 = vector.shape_cast %49 : vector<1x1x8x2xf32> to vector<8x2xf32>
    %51 = vector.shape_cast %48 : vector<8x2xf32> to vector<1x1x8x2xf32>
    tpu.vector_store %arg6[%c0_11, %c0_12, %c0_13, %c0_14], %51 {strides = array<i32>} : memref<1x1x8x2xf32, #tpu.memory_space<vmem>>, vector<1x1x8x2xf32>,
    return
  }
  func.func @transform_0(%arg0: i32, %arg1: i32) -> (i32, i32) {
    %c0_i32 = arith.constant 0 : i32
    %c0_i32_0 = arith.constant 0 : i32
    %c0_i32_1 = arith.constant 0 : i32
    return %c0_i32, %c0_i32_0 : i32, i32
  }
  func.func @transform_1(%arg0: i32, %arg1: i32) -> (i32, i32, i32) {
    %c0_i32 = arith.constant 0 : i32
    %c0_i32_0 = arith.constant 0 : i32
    return %arg0, %c0_i32, %arg1 : i32, i32, i32
  }
  func.func @transform_2(%arg0: i32, %arg1: i32) -> (i32, i32) {
    %c0_i32 = arith.constant 0 : i32
    %c0_i32_0 = arith.constant 0 : i32
    %c0_i32_1 = arith.constant 0 : i32
    return %c0_i32, %c0_i32_0 : i32, i32
  }
  func.func @transform_3(%arg0: i32, %arg1: i32) -> (i32, i32, i32) {
    %c0_i32 = arith.constant 0 : i32
    %c0_i32_0 = arith.constant 0 : i32
    return %arg0, %c0_i32, %arg1 : i32, i32, i32
  }
  func.func @transform_4(%arg0: i32, %arg1: i32) -> (i32, i32, i32, i32) {
    %c0_i32 = arith.constant 0 : i32
    %c0_i32_0 = arith.constant 0 : i32
    %c0_i32_1 = arith.constant 0 : i32
    return %arg0, %arg1, %c0_i32, %c0_i32_0 : i32, i32, i32, i32
  }
}

</mosaic_0001>

<llo_original>
// kernel: tpu_custom_call.1
$region0: #{tpu_custom_call.1}
  #allocation0 [shape = 'u32[]', space=smem, size = 0x4, offset = 0x4, fixed_abs, tag = 'smem constant byte address 0x4 - core index']
  #allocation1 [shape = 'u32[144,128]{1,0:T(1,128)}', space=vmem, size = 0x12000, scoped, tag = 'internal scratch']
  %s0 = inlined_call_operand.hbm [shape: f32[9,2048], index: 0, kind: input, shape index: {}]
  %s1 = inlined_call_operand.hbm [shape: f32[2,4,2048], index: 1, kind: input, shape index: {}]
  %s2 = inlined_call_operand.hbm [shape: bf16[8,36], index: 2, kind: input, shape index: {}]
  %s3 = inlined_call_operand.hbm [shape: bf16[2,8,2048], index: 3, kind: output, shape index: {0}]
  %s4 = inlined_call_operand.vmem [shape: f32[2,1,8,2], index: 4, kind: output, shape index: {1}]
  %5 = xla_tuple %s3, %s4
  %s6 = sld [smem:[#allocation0]]
  $region65: #{tpu_custom_call.1} parent=0
    _
  %s8 = ssub.s32 1, %s6
  %s9 = scalar_select 0, %s8, %s6
  $region1: #{tpu_custom_call.1} parent=0
    #allocation2 [shape = 'u8[131072]{0}', space=vmem, size = 0x20000, scoped, tag = 'input window, operand 0, single buffered']
    #allocation3 [shape = 's32[2]{0}', space=sflag, size = 0x8, scoped, tag = 'scoped memory for tpu_custom_call.1']
    #allocation4 [shape = 's32[2]{0}', space=sflag, size = 0x8, scoped, tag = 'scoped memory for tpu_custom_call.1']
    #allocation5 [shape = 'u8[65536]{0}', space=vmem, size = 0x10000, scoped, tag = 'input window, operand 1']
    #allocation6 [shape = 's32[2]{0}', space=sflag, size = 0x8, scoped, tag = 'scoped memory for tpu_custom_call.1']
    #allocation7 [shape = 'u8[2048]{0}', space=vmem, size = 0x800, scoped, tag = 'input window, operand 2, single buffered']
    #allocation8 [shape = 'u8[65536]{0}', space=vmem, size = 0x10000, scoped, tag = 'output window, operand 0']
    %10 = vsyncpa [#allocation3], 0
    %11 = vsyncpa [#allocation6], 0
    %s12 = scalar_lea.sflag [#allocation6], 1
    %13 = vsyncpa %s12, 0
    %14 = vsyncpa [#allocation4], 0
    %s15 = scalar_lea.sflag [#allocation4], 1
    %16 = vsyncpa %s15, 0
    loop: start=0, step=1, limit=4
    $region2: #{tpu_custom_call.1} parent=1 // loop_pre_header
      _
    $region3: #{tpu_custom_call.1} parent=1 // loop_header
      %s18 = sphi 0, %s22
      %p19 = scmp.ge.s32.totalorder %s18, 4
      %s25 = sphi 0, %s37
      %s26 = sphi 0, %s33
      %s27 = sphi 0, %s25
      %s28 = sphi 0, %s26
      %s29 = sphi 0, %s27
      %s30 = sphi 0, %s28
      %s38 = sphi 0, %s38
      %s40 = sphi 0, %s38
      %s41 = sphi 0, %s40
      %s55 = sphi 0, %s41
      %s63 = sphi 0, %s65
      %s66 = sphi 0, %s63
      %s67 = sphi 0, %s66
      %s83 = sphi 0, %s67
      %s87 = sphi 0, %s87
      %s89 = sphi 0, %s87
      %s90 = sphi 0, %s89
      %s104 = sphi 0, %s90
      %s112 = sphi 0, %s114
      %s115 = sphi 0, %s112
      %s116 = sphi 0, %s115
      %s132 = sphi 0, %s116
      %s140 = sphi 0, %s142
      %s143 = sphi 0, %s140
      %s144 = sphi 0, %s143
      %s160 = sphi 0, %s144
    $region4: #{tpu_custom_call.1} parent=1 // loop_header_branch
      %21 = sbr.rel (%p19) target = $region8
    $region5: #{tpu_custom_call.1} parent=1 // loop_body
      %s23 = ssub.s32 %s18, 1
      %s24 = ssub.s32 %s18, 2
      %s31 = sadd.s32 1, %s26
      %p32 = scmp.ge.s32.totalorder %s31, 1
      %s33 = scalar_select %p32, 0, %s31
      %s34 = sadd.s32 1, %s25
      %s35 = scalar_select %p32, %s34, %s25
      %p36 = scmp.ge.s32.totalorder %s35, 2
      %s37 = scalar_select %p36, 0, %s35
      %s39 = sadd.s32 %s38, 1
      %p42 = scmp.eq.s32.totalorder %s18, 1
      %p43 = scmp.ne.s32.totalorder %s38, %s40
      %p44 = scmp.eq.s32.totalorder %s18, 0
      %p45 = por %p43, %p44
      %p46 = scmp.ne.s32.totalorder %s38, %s40
      %p47 = scmp.eq.s32.totalorder %s23, 1
      %p48 = por %p46, %p47
      %p49 = scmp.ne.s32.totalorder %s40, %s41
      %p50 = scmp.eq.s32.totalorder %s23, 0
      %p51 = por %p49, %p50
      %p52 = scmp.ne.s32.totalorder %s40, %s41
      %p53 = scmp.eq.s32.totalorder %s24, 1
      %p54 = por %p52, %p53
      %p56 = scmp.ne.s32.totalorder %s41, %s55
      %p57 = scmp.eq.s32.totalorder %s24, 0
      %p58 = por %p56, %p57
      %s59 = ssub.s32 %s25, %s37
      %s60 = ssub.s32 %s26, %s33
      %s61 = sor.u32 %s59, %s60
      %p62 = scmp.eq.s32.totalorder %s61, 0
      %s64 = sadd.s32 %s63, 1
      %s65 = scalar_select %p62, %s63, %s64
      %p68 = pneg %p62
      %p69 = scmp.eq.s32.totalorder %s18, 1
      %p70 = por %p68, %p69
      %p71 = scmp.ne.s32.totalorder %s63, %s66
      %p72 = scmp.eq.s32.totalorder %s18, 0
      %p73 = por %p71, %p72
      %p74 = scmp.ne.s32.totalorder %s63, %s66
      %p75 = scmp.eq.s32.totalorder %s23, 1
      %p76 = por %p74, %p75
      %p77 = scmp.ne.s32.totalorder %s66, %s67
      %p78 = scmp.eq.s32.totalorder %s23, 0
      %p79 = por %p77, %p78
      %p80 = scmp.ne.s32.totalorder %s66, %s67
      %p81 = scmp.eq.s32.totalorder %s24, 1
      %p82 = por %p80, %p81
      %p84 = scmp.ne.s32.totalorder %s67, %s83
      %p85 = scmp.eq.s32.totalorder %s24, 0
      %p86 = por %p84, %p85
      %s88 = sadd.s32 %s87, 1
      %p91 = scmp.eq.s32.totalorder %s18, 1
      %p92 = scmp.ne.s32.totalorder %s87, %s89
      %p93 = scmp.eq.s32.totalorder %s18, 0
      %p94 = por %p92, %p93
      %p95 = scmp.ne.s32.totalorder %s87, %s89
      %p96 = scmp.eq.s32.totalorder %s23, 1
      %p97 = por %p95, %p96
      %p98 = scmp.ne.s32.totalorder %s89, %s90
      %p99 = scmp.eq.s32.totalorder %s23, 0
      %p100 = por %p98, %p99
      %p101 = scmp.ne.s32.totalorder %s89, %s90
      %p102 = scmp.eq.s32.totalorder %s24, 1
      %p103 = por %p101, %p102
      %p105 = scmp.ne.s32.totalorder %s90, %s104
      %p106 = scmp.eq.s32.totalorder %s24, 0
      %p107 = por %p105, %p106
      %s108 = ssub.s32 %s25, %s37
      %s109 = ssub.s32 %s26, %s33
      %s110 = sor.u32 %s108, %s109
      %p111 = scmp.eq.s32.totalorder %s110, 0
      %s113 = sadd.s32 %s112, 1
      %s114 = scalar_select %p111, %s112, %s113
      %p117 = pneg %p111
      %p118 = scmp.eq.s32.totalorder %s18, 1
      %p119 = por %p117, %p118
      %p120 = scmp.ne.s32.totalorder %s112, %s115
      %p121 = scmp.eq.s32.totalorder %s18, 0
      %p122 = por %p120, %p121
      %p123 = scmp.ne.s32.totalorder %s112, %s115
      %p124 = scmp.eq.s32.totalorder %s23, 1
      %p125 = por %p123, %p124
      %p126 = scmp.ne.s32.totalorder %s115, %s116
      %p127 = scmp.eq.s32.totalorder %s23, 0
      %p128 = por %p126, %p127
      %p129 = scmp.ne.s32.totalorder %s115, %s116
      %p130 = scmp.eq.s32.totalorder %s24, 1
      %p131 = por %p129, %p130
      %p133 = scmp.ne.s32.totalorder %s116, %s132
      %p134 = scmp.eq.s32.totalorder %s24, 0
      %p135 = por %p133, %p134
      %s136 = ssub.s32 %s25, %s37
      %s137 = ssub.s32 %s26, %s33
      %s138 = sor.u32 %s136, %s137
      %p139 = scmp.eq.s32.totalorder %s138, 0
      %s141 = sadd.s32 %s140, 1
      %s142 = scalar_select %p139, %s140, %s141
      %p145 = pneg %p139
      %p146 = scmp.eq.s32.totalorder %s18, 1
      %p147 = por %p145, %p146
      %p148 = scmp.ne.s32.totalorder %s140, %s143
      %p149 = scmp.eq.s32.totalorder %s18, 0
      %p150 = por %p148, %p149
      %p151 = scmp.ne.s32.totalorder %s140, %s143
      %p152 = scmp.eq.s32.totalorder %s23, 1
      %p153 = por %p151, %p152
      %p154 = scmp.ne.s32.totalorder %s143, %s144
      %p155 = scmp.eq.s32.totalorder %s23, 0
      %p156 = por %p154, %p155
      %p157 = scmp.ne.s32.totalorder %s143, %s144
      %p158 = scmp.eq.s32.totalorder %s24, 1
      %p159 = por %p157, %p158
      %p161 = scmp.ne.s32.totalorder %s144, %s160
      %p162 = scmp.eq.s32.totalorder %s24, 0
      %p163 = por %p161, %p162
      %p164 = scmp.le.s32.totalorder 1, %s18
      %p165 = scmp.lt.s32.totalorder %s18, 3
      %p166 = pnand %p164, %p165
      %p167 = pneg %p166
      // Predicated region
      $region9: #{tpu_custom_call.1} parent=5 // pred_check
        _
      $region10: #{tpu_custom_call.1} parent=5 // pred_check_branch
        %169 = sbr.rel (%p166) target = $region12
      $region11: #{tpu_custom_call.1} parent=5 // pred_region
        %s170 = ssub.s32 %s18, 1
        // Predicated region
        $region13: #{tpu_custom_call.1} parent=11 // pred_check
          %p171 = pneg %p51
        $region14: #{tpu_custom_call.1} parent=11 // pred_check_branch
          %173 = sbr.rel (%p171) target = $region16
        $region15: #{tpu_custom_call.1} parent=11 // pred_region
          %s175 = ssub.s32 4096, 4096
          %176 = vsyncadd [#allocation3], %s175
          %s177 = sshll.u32 [#allocation2], 4
          %s178 = int_to_ptr.vmem [resolvable:$true] %s177
          %183 = dma.hbm_to_vmem [thread:$0]  %s0, 4096, %s178, [#allocation3], 2048, 2048, 128
        $region16: #{tpu_custom_call.1} parent=11 // pred_fallthru
          _
        // Predicated region
        $region17: #{tpu_custom_call.1} parent=11 // pred_check
          %p184 = pneg %p100
        $region18: #{tpu_custom_call.1} parent=11 // pred_check_branch
          %186 = sbr.rel (%p184) target = $region20
        $region19: #{tpu_custom_call.1} parent=11 // pred_region
          %s188 = ssub.s32 64, 64
          %189 = vsyncadd [#allocation6], %s188
          %s191 = sshll.u32 [#allocation7], 4
          %s192 = int_to_ptr.vmem [resolvable:$true] %s191
          %194 = dma.hbm_to_vmem [thread:$0]  %s2, 64, %s192, [#allocation6]
        $region20: #{tpu_custom_call.1} parent=11 // pred_fallthru
          _
      $region12: #{tpu_custom_call.1} parent=5 // pred_fallthru
        _
      %p195 = scmp.lt.s32.totalorder %s18, 2
      // Predicated region
      $region21: #{tpu_custom_call.1} parent=5 // pred_check
        %p196 = pneg %p195
      $region22: #{tpu_custom_call.1} parent=5 // pred_check_branch
        %198 = sbr.rel (%p196) target = $region24
      $region23: #{tpu_custom_call.1} parent=5 // pred_region
        // Predicated region
        $region25: #{tpu_custom_call.1} parent=23 // pred_check
          %p199 = pneg %p73
        $region26: #{tpu_custom_call.1} parent=23 // pred_check_branch
          %201 = sbr.rel (%p199) target = $region28
        $region27: #{tpu_custom_call.1} parent=23 // pred_region
          %s202 = sand.u32 %s18, 1
          %s203 = scalar_lea.sflag [#allocation6], %s202
          %s204 = sand.u32 %s63, 1
          %s205 = smul.addr %s204, 64
          %s206 = scalar_lea.vmem [#allocation5], %s205
          %s207 = smul.u32 16, %s26
          %s209 = ssub.s32 1024, 1024
          %210 = vsyncadd %s203, %s209
          %s211 = smul.addr %s25, 16
          %s212 = sadd.s32 %s207, %s211
          %s213 = smul.addr %s212, 64
          %s214 = scalar_lea.hbm %s1, %s213
          %s216 = sshll.u32 %s206, 4
          %s217 = int_to_ptr.vmem [resolvable:$true] %s216
          %219 = dma.hbm_to_vmem [thread:$0]  %s214, 1024, %s217, %s203
        $region28: #{tpu_custom_call.1} parent=23 // pred_fallthru
          _
      $region24: #{tpu_custom_call.1} parent=5 // pred_fallthru
        _
      %p220 = scmp.le.s32.totalorder 1, %s18
      %p221 = scmp.lt.s32.totalorder %s18, 3
      %p222 = pnand %p220, %p221
      %p223 = pneg %p222
      // Predicated region
      $region29: #{tpu_custom_call.1} parent=5 // pred_check
        _
      $region30: #{tpu_custom_call.1} parent=5 // pred_check_branch
        %225 = sbr.rel (%p222) target = $region32
      $region31: #{tpu_custom_call.1} parent=5 // pred_region
        %s226 = ssub.s32 %s18, 1
        // Predicated region
        $region33: #{tpu_custom_call.1} parent=31 // pred_check
          %p227 = pneg %p51
        $region34: #{tpu_custom_call.1} parent=31 // pred_check_branch
          %229 = sbr.rel (%p227) target = $region36
        $region35: #{tpu_custom_call.1} parent=31 // pred_region
          %230 = dma.done [#allocation3], 4096
        $region36: #{tpu_custom_call.1} parent=31 // pred_fallthru
          _
        %s231 = sand.u32 %s23, 1
        %s232 = scalar_lea.sflag [#allocation6], %s231
        %s233 = sand.u32 %s66, 1
        %s234 = smul.addr %s233, 64
        %s235 = scalar_lea.vmem [#allocation5], %s234
        // Predicated region
        $region37: #{tpu_custom_call.1} parent=31 // pred_check
          %p236 = pneg %p79
        $region38: #{tpu_custom_call.1} parent=31 // pred_check_branch
          %238 = sbr.rel (%p236) target = $region40
        $region39: #{tpu_custom_call.1} parent=31 // pred_region
          %239 = dma.done %s232, 1024
        $region40: #{tpu_custom_call.1} parent=31 // pred_fallthru
          _
        // Predicated region
        $region41: #{tpu_custom_call.1} parent=31 // pred_check
          %p240 = pneg %p100
        $region42: #{tpu_custom_call.1} parent=31 // pred_check_branch
          %242 = sbr.rel (%p240) target = $region44
        $region43: #{tpu_custom_call.1} parent=31 // pred_region
          %243 = dma.done [#allocation6], 64
        $region44: #{tpu_custom_call.1} parent=31 // pred_fallthru
          _
        %p244 = pneg %p51
        %p245 = pneg %p48
        %s246 = sand.u32 %s23, 1
        %s247 = scalar_lea.sflag [#allocation6], %s246
        %s248 = sand.u32 %s66, 1
        %s249 = smul.addr %s248, 64
        %s250 = scalar_lea.vmem [#allocation5], %s249
        %p251 = pneg %p79
        %p252 = pneg %p76
        %p253 = pneg %p100
        %p254 = pneg %p97
        %p255 = pneg %p128
        %p256 = pneg %p125
        %s257 = sand.u32 %s115, 1
        %s258 = scalar_lea.sflag [#allocation4], %s257
        %s259 = sand.u32 %s115, 1
        %s260 = smul.addr %s259, 64
        %s261 = scalar_lea.vmem [#allocation8], %s260
        %p262 = pneg %p156
        %p263 = pneg %p153
        %p264 = scmp.lt.s32.totalorder %s27, 1
        %s265 = scalar_select %p264, %s27, 1
        %p266 = scmp.lt.s32.totalorder %s28, 0
        %s267 = scalar_select %p266, %s28, 0
        %s268 = sadd.s32 %s267, %s265
        %s269 = smul.addr %s268, 8
        %s270 = scalar_lea.vmem %s4, %s269
        %s271 = smul.u32 16, %s28
        %s272 = smul.u32 16, %s28
        %p273 = scmp.lt.s32.totalorder %s27, 1
        %s274 = scalar_select %p273, %s27, 1
        %p275 = scmp.lt.s32.totalorder %s28, 0
        %s276 = scalar_select %p275, %s28, 0
        %s277 = sadd.s32 %s276, %s274
        %s278 = smul.addr %s277, 8
        %s279 = scalar_lea.vmem %s4, %s278
        %v281 = vld [vmem:[%s235] sm:$0xff]
        %v282 = vld [vmem:[%s235 + $0x8] sm:$0xff]
        %v283 = vld [vmem:[%s235 + $0x10] sm:$0xff]
        %v284 = vld [vmem:[%s235 + $0x18] sm:$0xff]
        %v285 = vld [vmem:[%s235 + $0x20] sm:$0xff]
        %v286 = vld [vmem:[%s235 + $0x28] sm:$0xff]
        %v287 = vld [vmem:[%s235 + $0x30] sm:$0xff]
        %v288 = vld [vmem:[%s235 + $0x38] sm:$0xff]
        %v289 = vld [vmem:[#allocation2] sm:$0xff]
        %v290 = vld [vmem:[#allocation2 + $0x8] sm:$0xff]
        %v291 = vld [vmem:[#allocation2 + $0x10] sm:$0xff]
        %v292 = vld [vmem:[#allocation2 + $0x18] sm:$0xff]
        %v293 = vld [vmem:[#allocation2 + $0x20] sm:$0xff]
        %v294 = vld [vmem:[#allocation2 + $0x28] sm:$0xff]
        %v295 = vld [vmem:[#allocation2 + $0x30] sm:$0xff]
        %v296 = vld [vmem:[#allocation2 + $0x38] sm:$0xff]
        %v297 = vld [vmem:[#allocation2 + $0x40] sm:$0xff]
        %v298 = vld [vmem:[#allocation2 + $0x48] sm:$0xff]
        %v299 = vld [vmem:[#allocation2 + $0x50] sm:$0xff]
        %v300 = vld [vmem:[#allocation2 + $0x58] sm:$0xff]
        %v301 = vld [vmem:[#allocation2 + $0x60] sm:$0xff]
        %v302 = vld [vmem:[#allocation2 + $0x68] sm:$0xff]
        %v303 = vld [vmem:[#allocation2 + $0x70] sm:$0xff]
        %v304 = vld [vmem:[#allocation2 + $0x78] sm:$0xff]
        %v305 = vld [vmem:[#allocation2 + $0x80] sm:$0x1]
        %v306 = vld [vmem:[#allocation2 + $0x88] sm:$0x1]
        %v307 = vld [vmem:[#allocation2 + $0x90] sm:$0x1]
        %v308 = vld [vmem:[#allocation2 + $0x98] sm:$0x1]
        %v309 = vld [vmem:[#allocation2 + $0xa0] sm:$0x1]
        %v310 = vld [vmem:[#allocation2 + $0xa8] sm:$0x1]
        %v311 = vld [vmem:[#allocation2 + $0xb0] sm:$0x1]
        %v312 = vld [vmem:[#allocation2 + $0xb8] sm:$0x1]
        %v313 = vld [vmem:[#allocation2 + $0xc0] sm:$0x1]
        %v314 = vld [vmem:[#allocation2 + $0xc8] sm:$0x1]
        %v315 = vld [vmem:[#allocation2 + $0xd0] sm:$0x1]
        %v316 = vld [vmem:[#allocation2 + $0xd8] sm:$0x1]
        %v317 = vld [vmem:[#allocation2 + $0xe0] sm:$0x1]
        %v318 = vld [vmem:[#allocation2 + $0xe8] sm:$0x1]
        %v319 = vld [vmem:[#allocation2 + $0xf0] sm:$0x1]
        %v320 = vld [vmem:[#allocation2 + $0xf8] sm:$0x1]
        %v321 = vld [vmem:[#allocation7] sm:$0xf]
        %v330 = vcombine.high %v281, %v281
        %v331 = vcombine.high %v282, %v282
        %v332 = vcombine.high %v283, %v283
        %v333 = vcombine.high %v284, %v284
        %v334 = vcombine.high %v285, %v285
        %v335 = vcombine.high %v286, %v286
        %v336 = vcombine.high %v287, %v287
        %v337 = vcombine.high %v288, %v288
        %346 = vrot.lane.b32.xlu0 %v281, 17
        %v347 = vpop.permute.xlu0 %346
        %348 = vrot.lane.b32.xlu0 %v330, 17
        %v349 = vpop.permute.xlu0 %348
        %350 = vrot.lane.b32.xlu0 %v282, 17
        %v351 = vpop.permute.xlu0 %350
        %352 = vrot.lane.b32.xlu0 %v331, 17
        %v353 = vpop.permute.xlu0 %352
        %354 = vrot.lane.b32.xlu0 %v283, 17
        %v355 = vpop.permute.xlu0 %354
        %356 = vrot.lane.b32.xlu0 %v332, 17
        %v357 = vpop.permute.xlu0 %356
        %358 = vrot.lane.b32.xlu0 %v284, 17
        %v359 = vpop.permute.xlu0 %358
        %360 = vrot.lane.b32.xlu0 %v333, 17
        %v361 = vpop.permute.xlu0 %360
        %362 = vrot.lane.b32.xlu0 %v285, 17
        %v363 = vpop.permute.xlu0 %362
        %364 = vrot.lane.b32.xlu0 %v334, 17
        %v365 = vpop.permute.xlu0 %364
        %366 = vrot.lane.b32.xlu0 %v286, 17
        %v367 = vpop.permute.xlu0 %366
        %368 = vrot.lane.b32.xlu0 %v335, 17
        %v369 = vpop.permute.xlu0 %368
        %370 = vrot.lane.b32.xlu0 %v287, 17
        %v371 = vpop.permute.xlu0 %370
        %372 = vrot.lane.b32.xlu0 %v336, 17
        %v373 = vpop.permute.xlu0 %372
        %374 = vrot.lane.b32.xlu0 %v288, 17
        %v375 = vpop.permute.xlu0 %374
        %376 = vrot.lane.b32.xlu0 %v337, 17
        %v377 = vpop.permute.xlu0 %376
        %v378 = vlaneseq
        %v379 = vand.u32 %v378, 127
        %vm380 = vcmp.lt.s32.totalorder %v379, 17
        %v381 = vsel %vm380, %v375, %v377
        %v382 = vsel %vm380, %v373, %v375
        %v383 = vsel %vm380, %v371, %v373
        %v384 = vsel %vm380, %v369, %v371
        %v385 = vsel %vm380, %v367, %v369
        %v386 = vsel %vm380, %v365, %v367
        %v387 = vsel %vm380, %v363, %v365
        %v388 = vsel %vm380, %v361, %v363
        %v389 = vsel %vm380, %v359, %v361
        %v390 = vsel %vm380, %v357, %v359
        %v391 = vsel %vm380, %v355, %v357
        %v392 = vsel %vm380, %v353, %v355
        %v393 = vsel %vm380, %v351, %v353
        %v394 = vsel %vm380, %v349, %v351
        %v395 = vsel %vm380, %v347, %v349
        %v396 = vsel %vm380, %v377, %v347
        %v397 = vlaneseq
        %v398 = vshrl.u32 %v397, 7
        %v399 = vsub.s32 0, %v398
        %v400 = vrot.slane %v289, %v399
        %v401 = vlaneseq
        %v402 = vshrl.u32 %v401, 7
        %v403 = vsub.s32 0, %v402
        %v404 = vrot.slane %v290, %v403
        %v405 = vlaneseq
        %v406 = vshrl.u32 %v405, 7
        %v407 = vsub.s32 0, %v406
        %v408 = vrot.slane %v291, %v407
        %v409 = vlaneseq
        %v410 = vshrl.u32 %v409, 7
        %v411 = vsub.s32 0, %v410
        %v412 = vrot.slane %v292, %v411
        %v413 = vlaneseq
        %v414 = vshrl.u32 %v413, 7
        %v415 = vsub.s32 0, %v414
        %v416 = vrot.slane %v293, %v415
        %v417 = vlaneseq
        %v418 = vshrl.u32 %v417, 7
        %v419 = vsub.s32 0, %v418
        %v420 = vrot.slane %v294, %v419
        %v421 = vlaneseq
        %v422 = vshrl.u32 %v421, 7
        %v423 = vsub.s32 0, %v422
        %v424 = vrot.slane %v295, %v423
        %v425 = vlaneseq
        %v426 = vshrl.u32 %v425, 7
        %v427 = vsub.s32 0, %v426
        %v428 = vrot.slane %v296, %v427
        %v429 = vlaneseq
        %v430 = vshrl.u32 %v429, 7
        %v431 = vsub.s32 0, %v430
        %v432 = vrot.slane %v297, %v431
        %v433 = vlaneseq
        %v434 = vshrl.u32 %v433, 7
        %v435 = vsub.s32 0, %v434
        %v436 = vrot.slane %v298, %v435
        %v437 = vlaneseq
        %v438 = vshrl.u32 %v437, 7
        %v439 = vsub.s32 0, %v438
        %v440 = vrot.slane %v299, %v439
        %v441 = vlaneseq
        %v442 = vshrl.u32 %v441, 7
        %v443 = vsub.s32 0, %v442
        %v444 = vrot.slane %v300, %v443
        %v445 = vlaneseq
        %v446 = vshrl.u32 %v445, 7
        %v447 = vsub.s32 0, %v446
        %v448 = vrot.slane %v301, %v447
        %v449 = vlaneseq
        %v450 = vshrl.u32 %v449, 7
        %v451 = vsub.s32 0, %v450
        %v452 = vrot.slane %v302, %v451
        %v453 = vlaneseq
        %v454 = vshrl.u32 %v453, 7
        %v455 = vsub.s32 0, %v454
        %v456 = vrot.slane %v303, %v455
        %v457 = vlaneseq
        %v458 = vshrl.u32 %v457, 7
        %v459 = vsub.s32 0, %v458
        %v460 = vrot.slane %v304, %v459
        %v461 = vmul.f32 %v396, %v400
        %v462 = vmul.f32 %v395, %v404
        %v463 = vmul.f32 %v394, %v408
        %v464 = vmul.f32 %v393, %v412
        %v465 = vmul.f32 %v392, %v416
        %v466 = vmul.f32 %v391, %v420
        %v467 = vmul.f32 %v390, %v424
        %v468 = vmul.f32 %v389, %v428
        %v469 = vmul.f32 %v388, %v432
        %v470 = vmul.f32 %v387, %v436
        %v471 = vmul.f32 %v386, %v440
        %v472 = vmul.f32 %v385, %v444
        %v473 = vmul.f32 %v384, %v448
        %v474 = vmul.f32 %v383, %v452
        %v475 = vmul.f32 %v382, %v456
        %v476 = vmul.f32 %v381, %v460
        %477 = vrot.lane.b32.xlu0 %v281, 16
        %v478 = vpop.permute.xlu0 %477
        %479 = vrot.lane.b32.xlu0 %v330, 16
        %v480 = vpop.permute.xlu0 %479
        %481 = vrot.lane.b32.xlu0 %v282, 16
        %v482 = vpop.permute.xlu0 %481
        %483 = vrot.lane.b32.xlu0 %v331, 16
        %v484 = vpop.permute.xlu0 %483
        %485 = vrot.lane.b32.xlu0 %v283, 16
        %v486 = vpop.permute.xlu0 %485
        %487 = vrot.lane.b32.xlu0 %v332, 16
        %v488 = vpop.permute.xlu0 %487
        %489 = vrot.lane.b32.xlu0 %v284, 16
        %v490 = vpop.permute.xlu0 %489
        %491 = vrot.lane.b32.xlu0 %v333, 16
        %v492 = vpop.permute.xlu0 %491
        %493 = vrot.lane.b32.xlu0 %v285, 16
        %v494 = vpop.permute.xlu0 %493
        %495 = vrot.lane.b32.xlu0 %v334, 16
        %v496 = vpop.permute.xlu0 %495
        %497 = vrot.lane.b32.xlu0 %v286, 16
        %v498 = vpop.permute.xlu0 %497
        %499 = vrot.lane.b32.xlu0 %v335, 16
        %v500 = vpop.permute.xlu0 %499
        %501 = vrot.lane.b32.xlu0 %v287, 16
        %v502 = vpop.permute.xlu0 %501
        %503 = vrot.lane.b32.xlu0 %v336, 16
        %v504 = vpop.permute.xlu0 %503
        %505 = vrot.lane.b32.xlu0 %v288, 16
        %v506 = vpop.permute.xlu0 %505
        %507 = vrot.lane.b32.xlu0 %v337, 16
        %v508 = vpop.permute.xlu0 %507
        %vm509 = vcmp.lt.s32.totalorder %v379, 16
        %v510 = vsel %vm509, %v506, %v508
        %v511 = vsel %vm509, %v504, %v506
        %v512 = vsel %vm509, %v502, %v504
        %v513 = vsel %vm509, %v500, %v502
        %v514 = vsel %vm509, %v498, %v500
        %v515 = vsel %vm509, %v496, %v498
        %v516 = vsel %vm509, %v494, %v496
        %v517 = vsel %vm509, %v492, %v494
        %v518 = vsel %vm509, %v490, %v492
        %v519 = vsel %vm509, %v488, %v490
        %v520 = vsel %vm509, %v486, %v488
        %v521 = vsel %vm509, %v484, %v486
        %v522 = vsel %vm509, %v482, %v484
        %v523 = vsel %vm509, %v480, %v482
        %v524 = vsel %vm509, %v478, %v480
        %v525 = vsel %vm509, %v508, %v478
        %v526 = vlaneseq
        %v527 = vshrl.u32 %v526, 7
        %v528 = vsub.s32 1, %v527
        %v529 = vrot.slane %v289, %v528
        %v530 = vlaneseq
        %v531 = vshrl.u32 %v530, 7
        %v532 = vsub.s32 1, %v531
        %v533 = vrot.slane %v290, %v532
        %v534 = vlaneseq
        %v535 = vshrl.u32 %v534, 7
        %v536 = vsub.s32 1, %v535
        %v537 = vrot.slane %v291, %v536
        %v538 = vlaneseq
        %v539 = vshrl.u32 %v538, 7
        %v540 = vsub.s32 1, %v539
        %v541 = vrot.slane %v292, %v540
        %v542 = vlaneseq
        %v543 = vshrl.u32 %v542, 7
        %v544 = vsub.s32 1, %v543
        %v545 = vrot.slane %v293, %v544
        %v546 = vlaneseq
        %v547 = vshrl.u32 %v546, 7
        %v548 = vsub.s32 1, %v547
        %v549 = vrot.slane %v294, %v548
        %v550 = vlaneseq
        %v551 = vshrl.u32 %v550, 7
        %v552 = vsub.s32 1, %v551
        %v553 = vrot.slane %v295, %v552
        %v554 = vlaneseq
        %v555 = vshrl.u32 %v554, 7
        %v556 = vsub.s32 1, %v555
        %v557 = vrot.slane %v296, %v556
        %v558 = vlaneseq
        %v559 = vshrl.u32 %v558, 7
        %v560 = vsub.s32 1, %v559
        %v561 = vrot.slane %v297, %v560
        %v562 = vlaneseq
        %v563 = vshrl.u32 %v562, 7
        %v564 = vsub.s32 1, %v563
        %v565 = vrot.slane %v298, %v564
        %v566 = vlaneseq
        %v567 = vshrl.u32 %v566, 7
        %v568 = vsub.s32 1, %v567
        %v569 = vrot.slane %v299, %v568
        %v570 = vlaneseq
        %v571 = vshrl.u32 %v570, 7
        %v572 = vsub.s32 1, %v571
        %v573 = vrot.slane %v300, %v572
        %v574 = vlaneseq
        %v575 = vshrl.u32 %v574, 7
        %v576 = vsub.s32 1, %v575
        %v577 = vrot.slane %v301, %v576
        %v578 = vlaneseq
        %v579 = vshrl.u32 %v578, 7
        %v580 = vsub.s32 1, %v579
        %v581 = vrot.slane %v302, %v580
        %v582 = vlaneseq
        %v583 = vshrl.u32 %v582, 7
        %v584 = vsub.s32 1, %v583
        %v585 = vrot.slane %v303, %v584
        %v586 = vlaneseq
        %v587 = vshrl.u32 %v586, 7
        %v588 = vsub.s32 1, %v587
        %v589 = vrot.slane %v304, %v588
        %v590 = vmul.f32 %v525, %v529
        %v591 = vmul.f32 %v524, %v533
        %v592 = vmul.f32 %v523, %v537
        %v593 = vmul.f32 %v522, %v541
        %v594 = vmul.f32 %v521, %v545
        %v595 = vmul.f32 %v520, %v549
        %v596 = vmul.f32 %v519, %v553
        %v597 = vmul.f32 %v518, %v557
        %v598 = vmul.f32 %v517, %v561
        %v599 = vmul.f32 %v516, %v565
        %v600 = vmul.f32 %v515, %v569
        %v601 = vmul.f32 %v514, %v573
        %v602 = vmul.f32 %v513, %v577
        %v603 = vmul.f32 %v512, %v581
        %v604 = vmul.f32 %v511, %v585
        %v605 = vmul.f32 %v510, %v589
        %606 = vrot.lane.b32.xlu0 %v281, 15
        %v607 = vpop.permute.xlu0 %606
        %608 = vrot.lane.b32.xlu0 %v330, 15
        %v609 = vpop.permute.xlu0 %608
        %610 = vrot.lane.b32.xlu0 %v282, 15
        %v611 = vpop.permute.xlu0 %610
        %612 = vrot.lane.b32.xlu0 %v331, 15
        %v613 = vpop.permute.xlu0 %612
        %614 = vrot.lane.b32.xlu0 %v283, 15
        %v615 = vpop.permute.xlu0 %614
        %616 = vrot.lane.b32.xlu0 %v332, 15
        %v617 = vpop.permute.xlu0 %616
        %618 = vrot.lane.b32.xlu0 %v284, 15
        %v619 = vpop.permute.xlu0 %618
        %620 = vrot.lane.b32.xlu0 %v333, 15
        %v621 = vpop.permute.xlu0 %620
        %622 = vrot.lane.b32.xlu0 %v285, 15
        %v623 = vpop.permute.xlu0 %622
        %624 = vrot.lane.b32.xlu0 %v334, 15
        %v625 = vpop.permute.xlu0 %624
        %626 = vrot.lane.b32.xlu0 %v286, 15
        %v627 = vpop.permute.xlu0 %626
        %628 = vrot.lane.b32.xlu0 %v335, 15
        %v629 = vpop.permute.xlu0 %628
        %630 = vrot.lane.b32.xlu0 %v287, 15
        %v631 = vpop.permute.xlu0 %630
        %632 = vrot.lane.b32.xlu0 %v336, 15
        %v633 = vpop.permute.xlu0 %632
        %634 = vrot.lane.b32.xlu0 %v288, 15
        %v635 = vpop.permute.xlu0 %634
        %636 = vrot.lane.b32.xlu0 %v337, 15
        %v637 = vpop.permute.xlu0 %636
        %vm638 = vcmp.lt.s32.totalorder %v379, 15
        %v639 = vsel %vm638, %v635, %v637
        %v640 = vsel %vm638, %v633, %v635
        %v641 = vsel %vm638, %v631, %v633
        %v642 = vsel %vm638, %v629, %v631
        %v643 = vsel %vm638, %v627, %v629
        %v644 = vsel %vm638, %v625, %v627
        %v645 = vsel %vm638, %v623, %v625
        %v646 = vsel %vm638, %v621, %v623
        %v647 = vsel %vm638, %v619, %v621
        %v648 = vsel %vm638, %v617, %v619
        %v649 = vsel %vm638, %v615, %v617
        %v650 = vsel %vm638, %v613, %v615
        %v651 = vsel %vm638, %v611, %v613
        %v652 = vsel %vm638, %v609, %v611
        %v653 = vsel %vm638, %v607, %v609
        %v654 = vsel %vm638, %v637, %v607
        %v655 = vlaneseq
        %v656 = vshrl.u32 %v655, 7
        %v657 = vsub.s32 2, %v656
        %v658 = vrot.slane %v289, %v657
        %v659 = vlaneseq
        %v660 = vshrl.u32 %v659, 7
        %v661 = vsub.s32 2, %v660
        %v662 = vrot.slane %v290, %v661
        %v663 = vlaneseq
        %v664 = vshrl.u32 %v663, 7
        %v665 = vsub.s32 2, %v664
        %v666 = vrot.slane %v291, %v665
        %v667 = vlaneseq
        %v668 = vshrl.u32 %v667, 7
        %v669 = vsub.s32 2, %v668
        %v670 = vrot.slane %v292, %v669
        %v671 = vlaneseq
        %v672 = vshrl.u32 %v671, 7
        %v673 = vsub.s32 2, %v672
        %v674 = vrot.slane %v293, %v673
        %v675 = vlaneseq
        %v676 = vshrl.u32 %v675, 7
        %v677 = vsub.s32 2, %v676
        %v678 = vrot.slane %v294, %v677
        %v679 = vlaneseq
        %v680 = vshrl.u32 %v679, 7
        %v681 = vsub.s32 2, %v680
        %v682 = vrot.slane %v295, %v681
        %v683 = vlaneseq
        %v684 = vshrl.u32 %v683, 7
        %v685 = vsub.s32 2, %v684
        %v686 = vrot.slane %v296, %v685
        %v687 = vlaneseq
        %v688 = vshrl.u32 %v687, 7
        %v689 = vsub.s32 2, %v688
        %v690 = vrot.slane %v297, %v689
        %v691 = vlaneseq
        %v692 = vshrl.u32 %v691, 7
        %v693 = vsub.s32 2, %v692
        %v694 = vrot.slane %v298, %v693
        %v695 = vlaneseq
        %v696 = vshrl.u32 %v695, 7
        %v697 = vsub.s32 2, %v696
        %v698 = vrot.slane %v299, %v697
        %v699 = vlaneseq
        %v700 = vshrl.u32 %v699, 7
        %v701 = vsub.s32 2, %v700
        %v702 = vrot.slane %v300, %v701
        %v703 = vlaneseq
        %v704 = vshrl.u32 %v703, 7
        %v705 = vsub.s32 2, %v704
        %v706 = vrot.slane %v301, %v705
        %v707 = vlaneseq
        %v708 = vshrl.u32 %v707, 7
        %v709 = vsub.s32 2, %v708
        %v710 = vrot.slane %v302, %v709
        %v711 = vlaneseq
        %v712 = vshrl.u32 %v711, 7
        %v713 = vsub.s32 2, %v712
        %v714 = vrot.slane %v303, %v713
        %v715 = vlaneseq
        %v716 = vshrl.u32 %v715, 7
        %v717 = vsub.s32 2, %v716
        %v718 = vrot.slane %v304, %v717
        %v719 = vmul.f32 %v654, %v658
        %v720 = vmul.f32 %v653, %v662
        %v721 = vmul.f32 %v652, %v666
        %v722 = vmul.f32 %v651, %v670
        %v723 = vmul.f32 %v650, %v674
        %v724 = vmul.f32 %v649, %v678
        %v725 = vmul.f32 %v648, %v682
        %v726 = vmul.f32 %v647, %v686
        %v727 = vmul.f32 %v646, %v690
        %v728 = vmul.f32 %v645, %v694
        %v729 = vmul.f32 %v644, %v698
        %v730 = vmul.f32 %v643, %v702
        %v731 = vmul.f32 %v642, %v706
        %v732 = vmul.f32 %v641, %v710
        %v733 = vmul.f32 %v640, %v714
        %v734 = vmul.f32 %v639, %v718
        %735 = vrot.lane.b32.xlu0 %v281, 1
        %v736 = vpop.permute.xlu0 %735
        %737 = vrot.lane.b32.xlu0 %v330, 1
        %v738 = vpop.permute.xlu0 %737
        %739 = vrot.lane.b32.xlu0 %v282, 1
        %v740 = vpop.permute.xlu0 %739
        %741 = vrot.lane.b32.xlu0 %v331, 1
        %v742 = vpop.permute.xlu0 %741
        %743 = vrot.lane.b32.xlu0 %v283, 1
        %v744 = vpop.permute.xlu0 %743
        %745 = vrot.lane.b32.xlu0 %v332, 1
        %v746 = vpop.permute.xlu0 %745
        %747 = vrot.lane.b32.xlu0 %v284, 1
        %v748 = vpop.permute.xlu0 %747
        %749 = vrot.lane.b32.xlu0 %v333, 1
        %v750 = vpop.permute.xlu0 %749
        %751 = vrot.lane.b32.xlu0 %v285, 1
        %v752 = vpop.permute.xlu0 %751
        %753 = vrot.lane.b32.xlu0 %v334, 1
        %v754 = vpop.permute.xlu0 %753
        %755 = vrot.lane.b32.xlu0 %v286, 1
        %v756 = vpop.permute.xlu0 %755
        %757 = vrot.lane.b32.xlu0 %v335, 1
        %v758 = vpop.permute.xlu0 %757
        %759 = vrot.lane.b32.xlu0 %v287, 1
        %v760 = vpop.permute.xlu0 %759
        %761 = vrot.lane.b32.xlu0 %v336, 1
        %v762 = vpop.permute.xlu0 %761
        %763 = vrot.lane.b32.xlu0 %v288, 1
        %v764 = vpop.permute.xlu0 %763
        %765 = vrot.lane.b32.xlu0 %v337, 1
        %v766 = vpop.permute.xlu0 %765
        %vm767 = vcmp.lt.s32.totalorder %v379, 1
        %v768 = vsel %vm767, %v764, %v766
        %v769 = vsel %vm767, %v762, %v764
        %v770 = vsel %vm767, %v760, %v762
        %v771 = vsel %vm767, %v758, %v760
        %v772 = vsel %vm767, %v756, %v758
        %v773 = vsel %vm767, %v754, %v756
        %v774 = vsel %vm767, %v752, %v754
        %v775 = vsel %vm767, %v750, %v752
        %v776 = vsel %vm767, %v748, %v750
        %v777 = vsel %vm767, %v746, %v748
        %v778 = vsel %vm767, %v744, %v746
        %v779 = vsel %vm767, %v742, %v744
        %v780 = vsel %vm767, %v740, %v742
        %v781 = vsel %vm767, %v738, %v740
        %v782 = vsel %vm767, %v736, %v738
        %v783 = vsel %vm767, %v766, %v736
        %v784 = vlaneseq
        %v785 = vshrl.u32 %v784, 7
        %v786 = vsub.s32 3, %v785
        %v787 = vrot.slane %v289, %v786
        %v788 = vlaneseq
        %v789 = vshrl.u32 %v788, 7
        %v790 = vsub.s32 3, %v789
        %v791 = vrot.slane %v290, %v790
        %v792 = vlaneseq
        %v793 = vshrl.u32 %v792, 7
        %v794 = vsub.s32 3, %v793
        %v795 = vrot.slane %v291, %v794
        %v796 = vlaneseq
        %v797 = vshrl.u32 %v796, 7
        %v798 = vsub.s32 3, %v797
        %v799 = vrot.slane %v292, %v798
        %v800 = vlaneseq
        %v801 = vshrl.u32 %v800, 7
        %v802 = vsub.s32 3, %v801
        %v803 = vrot.slane %v293, %v802
        %v804 = vlaneseq
        %v805 = vshrl.u32 %v804, 7
        %v806 = vsub.s32 3, %v805
        %v807 = vrot.slane %v294, %v806
        %v808 = vlaneseq
        %v809 = vshrl.u32 %v808, 7
        %v810 = vsub.s32 3, %v809
        %v811 = vrot.slane %v295, %v810
        %v812 = vlaneseq
        %v813 = vshrl.u32 %v812, 7
        %v814 = vsub.s32 3, %v813
        %v815 = vrot.slane %v296, %v814
        %v816 = vlaneseq
        %v817 = vshrl.u32 %v816, 7
        %v818 = vsub.s32 3, %v817
        %v819 = vrot.slane %v297, %v818
        %v820 = vlaneseq
        %v821 = vshrl.u32 %v820, 7
        %v822 = vsub.s32 3, %v821
        %v823 = vrot.slane %v298, %v822
        %v824 = vlaneseq
        %v825 = vshrl.u32 %v824, 7
        %v826 = vsub.s32 3, %v825
        %v827 = vrot.slane %v299, %v826
        %v828 = vlaneseq
        %v829 = vshrl.u32 %v828, 7
        %v830 = vsub.s32 3, %v829
        %v831 = vrot.slane %v300, %v830
        %v832 = vlaneseq
        %v833 = vshrl.u32 %v832, 7
        %v834 = vsub.s32 3, %v833
        %v835 = vrot.slane %v301, %v834
        %v836 = vlaneseq
        %v837 = vshrl.u32 %v836, 7
        %v838 = vsub.s32 3, %v837
        %v839 = vrot.slane %v302, %v838
        %v840 = vlaneseq
        %v841 = vshrl.u32 %v840, 7
        %v842 = vsub.s32 3, %v841
        %v843 = vrot.slane %v303, %v842
        %v844 = vlaneseq
        %v845 = vshrl.u32 %v844, 7
        %v846 = vsub.s32 3, %v845
        %v847 = vrot.slane %v304, %v846
        %v848 = vmul.f32 %v783, %v787
        %v849 = vmul.f32 %v782, %v791
        %v850 = vmul.f32 %v781, %v795
        %v851 = vmul.f32 %v780, %v799
        %v852 = vmul.f32 %v779, %v803
        %v853 = vmul.f32 %v778, %v807
        %v854 = vmul.f32 %v777, %v811
        %v855 = vmul.f32 %v776, %v815
        %v856 = vmul.f32 %v775, %v819
        %v857 = vmul.f32 %v774, %v823
        %v858 = vmul.f32 %v773, %v827
        %v859 = vmul.f32 %v772, %v831
        %v860 = vmul.f32 %v771, %v835
        %v861 = vmul.f32 %v770, %v839
        %v862 = vmul.f32 %v769, %v843
        %v863 = vmul.f32 %v768, %v847
        %864 = vrot.lane.b32.xlu0 %v281, 127
        %v865 = vpop.permute.xlu0 %864
        %866 = vrot.lane.b32.xlu0 %v330, 127
        %v867 = vpop.permute.xlu0 %866
        %868 = vrot.lane.b32.xlu0 %v282, 127
        %v869 = vpop.permute.xlu0 %868
        %870 = vrot.lane.b32.xlu0 %v331, 127
        %v871 = vpop.permute.xlu0 %870
        %872 = vrot.lane.b32.xlu0 %v283, 127
        %v873 = vpop.permute.xlu0 %872
        %874 = vrot.lane.b32.xlu0 %v332, 127
        %v875 = vpop.permute.xlu0 %874
        %876 = vrot.lane.b32.xlu0 %v284, 127
        %v877 = vpop.permute.xlu0 %876
        %878 = vrot.lane.b32.xlu0 %v333, 127
        %v879 = vpop.permute.xlu0 %878
        %880 = vrot.lane.b32.xlu0 %v285, 127
        %v881 = vpop.permute.xlu0 %880
        %882 = vrot.lane.b32.xlu0 %v334, 127
        %v883 = vpop.permute.xlu0 %882
        %884 = vrot.lane.b32.xlu0 %v286, 127
        %v885 = vpop.permute.xlu0 %884
        %886 = vrot.lane.b32.xlu0 %v335, 127
        %v887 = vpop.permute.xlu0 %886
        %888 = vrot.lane.b32.xlu0 %v287, 127
        %v889 = vpop.permute.xlu0 %888
        %890 = vrot.lane.b32.xlu0 %v336, 127
        %v891 = vpop.permute.xlu0 %890
        %892 = vrot.lane.b32.xlu0 %v288, 127
        %v893 = vpop.permute.xlu0 %892
        %894 = vrot.lane.b32.xlu0 %v337, 127
        %v895 = vpop.permute.xlu0 %894
        %vm896 = vcmp.lt.s32.totalorder %v379, 127
        %v897 = vsel %vm896, %v893, %v895
        %v898 = vsel %vm896, %v891, %v893
        %v899 = vsel %vm896, %v889, %v891
        %v900 = vsel %vm896, %v887, %v889
        %v901 = vsel %vm896, %v885, %v887
        %v902 = vsel %vm896, %v883, %v885
        %v903 = vsel %vm896, %v881, %v883
        %v904 = vsel %vm896, %v879, %v881
        %v905 = vsel %vm896, %v877, %v879
        %v906 = vsel %vm896, %v875, %v877
        %v907 = vsel %vm896, %v873, %v875
        %v908 = vsel %vm896, %v871, %v873
        %v909 = vsel %vm896, %v869, %v871
        %v910 = vsel %vm896, %v867, %v869
        %v911 = vsel %vm896, %v865, %v867
        %v912 = vsel %vm896, %v895, %v865
        %v913 = vlaneseq
        %v914 = vshrl.u32 %v913, 7
        %v915 = vsub.s32 5, %v914
        %v916 = vrot.slane %v289, %v915
        %v917 = vlaneseq
        %v918 = vshrl.u32 %v917, 7
        %v919 = vsub.s32 5, %v918
        %v920 = vrot.slane %v290, %v919
        %v921 = vlaneseq
        %v922 = vshrl.u32 %v921, 7
        %v923 = vsub.s32 5, %v922
        %v924 = vrot.slane %v291, %v923
        %v925 = vlaneseq
        %v926 = vshrl.u32 %v925, 7
        %v927 = vsub.s32 5, %v926
        %v928 = vrot.slane %v292, %v927
        %v929 = vlaneseq
        %v930 = vshrl.u32 %v929, 7
        %v931 = vsub.s32 5, %v930
        %v932 = vrot.slane %v293, %v931
        %v933 = vlaneseq
        %v934 = vshrl.u32 %v933, 7
        %v935 = vsub.s32 5, %v934
        %v936 = vrot.slane %v294, %v935
        %v937 = vlaneseq
        %v938 = vshrl.u32 %v937, 7
        %v939 = vsub.s32 5, %v938
        %v940 = vrot.slane %v295, %v939
        %v941 = vlaneseq
        %v942 = vshrl.u32 %v941, 7
        %v943 = vsub.s32 5, %v942
        %v944 = vrot.slane %v296, %v943
        %v945 = vlaneseq
        %v946 = vshrl.u32 %v945, 7
        %v947 = vsub.s32 5, %v946
        %v948 = vrot.slane %v297, %v947
        %v949 = vlaneseq
        %v950 = vshrl.u32 %v949, 7
        %v951 = vsub.s32 5, %v950
        %v952 = vrot.slane %v298, %v951
        %v953 = vlaneseq
        %v954 = vshrl.u32 %v953, 7
        %v955 = vsub.s32 5, %v954
        %v956 = vrot.slane %v299, %v955
        %v957 = vlaneseq
        %v958 = vshrl.u32 %v957, 7
        %v959 = vsub.s32 5, %v958
        %v960 = vrot.slane %v300, %v959
        %v961 = vlaneseq
        %v962 = vshrl.u32 %v961, 7
        %v963 = vsub.s32 5, %v962
        %v964 = vrot.slane %v301, %v963
        %v965 = vlaneseq
        %v966 = vshrl.u32 %v965, 7
        %v967 = vsub.s32 5, %v966
        %v968 = vrot.slane %v302, %v967
        %v969 = vlaneseq
        %v970 = vshrl.u32 %v969, 7
        %v971 = vsub.s32 5, %v970
        %v972 = vrot.slane %v303, %v971
        %v973 = vlaneseq
        %v974 = vshrl.u32 %v973, 7
        %v975 = vsub.s32 5, %v974
        %v976 = vrot.slane %v304, %v975
        %v977 = vmul.f32 %v911, %v916
        %v978 = vmul.f32 %v910, %v920
        %v979 = vmul.f32 %v909, %v924
        %v980 = vmul.f32 %v908, %v928
        %v981 = vmul.f32 %v907, %v932
        %v982 = vmul.f32 %v906, %v936
        %v983 = vmul.f32 %v905, %v940
        %v984 = vmul.f32 %v904, %v944
        %v985 = vmul.f32 %v903, %v948
        %v986 = vmul.f32 %v902, %v952
        %v987 = vmul.f32 %v901, %v956
        %v988 = vmul.f32 %v900, %v960
        %v989 = vmul.f32 %v899, %v964
        %v990 = vmul.f32 %v898, %v968
        %v991 = vmul.f32 %v897, %v972
        %v992 = vmul.f32 %v912, %v976
        %993 = vrot.lane.b32.xlu0 %v281, 113
        %v994 = vpop.permute.xlu0 %993
        %995 = vrot.lane.b32.xlu0 %v330, 113
        %v996 = vpop.permute.xlu0 %995
        %997 = vrot.lane.b32.xlu0 %v282, 113
        %v998 = vpop.permute.xlu0 %997
        %999 = vrot.lane.b32.xlu0 %v331, 113
        %v1000 = vpop.permute.xlu0 %999
        %1001 = vrot.lane.b32.xlu0 %v283, 113
        %v1002 = vpop.permute.xlu0 %1001
        %1003 = vrot.lane.b32.xlu0 %v332, 113
        %v1004 = vpop.permute.xlu0 %1003
        %1005 = vrot.lane.b32.xlu0 %v284, 113
        %v1006 = vpop.permute.xlu0 %1005
        %1007 = vrot.lane.b32.xlu0 %v333, 113
        %v1008 = vpop.permute.xlu0 %1007
        %1009 = vrot.lane.b32.xlu0 %v285, 113
        %v1010 = vpop.permute.xlu0 %1009
        %1011 = vrot.lane.b32.xlu0 %v334, 113
        %v1012 = vpop.permute.xlu0 %1011
        %1013 = vrot.lane.b32.xlu0 %v286, 113
        %v1014 = vpop.permute.xlu0 %1013
        %1015 = vrot.lane.b32.xlu0 %v335, 113
        %v1016 = vpop.permute.xlu0 %1015
        %1017 = vrot.lane.b32.xlu0 %v287, 113
        %v1018 = vpop.permute.xlu0 %1017
        %1019 = vrot.lane.b32.xlu0 %v336, 113
        %v1020 = vpop.permute.xlu0 %1019
        %1021 = vrot.lane.b32.xlu0 %v288, 113
        %v1022 = vpop.permute.xlu0 %1021
        %1023 = vrot.lane.b32.xlu0 %v337, 113
        %v1024 = vpop.permute.xlu0 %1023
        %vm1025 = vcmp.lt.s32.totalorder %v379, 113
        %v1026 = vsel %vm1025, %v1022, %v1024
        %v1027 = vsel %vm1025, %v1020, %v1022
        %v1028 = vsel %vm1025, %v1018, %v1020
        %v1029 = vsel %vm1025, %v1016, %v1018
        %v1030 = vsel %vm1025, %v1014, %v1016
        %v1031 = vsel %vm1025, %v1012, %v1014
        %v1032 = vsel %vm1025, %v1010, %v1012
        %v1033 = vsel %vm1025, %v1008, %v1010
        %v1034 = vsel %vm1025, %v1006, %v1008
        %v1035 = vsel %vm1025, %v1004, %v1006
        %v1036 = vsel %vm1025, %v1002, %v1004
        %v1037 = vsel %vm1025, %v1000, %v1002
        %v1038 = vsel %vm1025, %v998, %v1000
        %v1039 = vsel %vm1025, %v996, %v998
        %v1040 = vsel %vm1025, %v994, %v996
        %v1041 = vsel %vm1025, %v1024, %v994
        %v1042 = vlaneseq
        %v1043 = vshrl.u32 %v1042, 7
        %v1044 = vsub.s32 6, %v1043
        %v1045 = vrot.slane %v289, %v1044
        %v1046 = vlaneseq
        %v1047 = vshrl.u32 %v1046, 7
        %v1048 = vsub.s32 6, %v1047
        %v1049 = vrot.slane %v290, %v1048
        %v1050 = vlaneseq
        %v1051 = vshrl.u32 %v1050, 7
        %v1052 = vsub.s32 6, %v1051
        %v1053 = vrot.slane %v291, %v1052
        %v1054 = vlaneseq
        %v1055 = vshrl.u32 %v1054, 7
        %v1056 = vsub.s32 6, %v1055
        %v1057 = vrot.slane %v292, %v1056
        %v1058 = vlaneseq
        %v1059 = vshrl.u32 %v1058, 7
        %v1060 = vsub.s32 6, %v1059
        %v1061 = vrot.slane %v293, %v1060
        %v1062 = vlaneseq
        %v1063 = vshrl.u32 %v1062, 7
        %v1064 = vsub.s32 6, %v1063
        %v1065 = vrot.slane %v294, %v1064
        %v1066 = vlaneseq
        %v1067 = vshrl.u32 %v1066, 7
        %v1068 = vsub.s32 6, %v1067
        %v1069 = vrot.slane %v295, %v1068
        %v1070 = vlaneseq
        %v1071 = vshrl.u32 %v1070, 7
        %v1072 = vsub.s32 6, %v1071
        %v1073 = vrot.slane %v296, %v1072
        %v1074 = vlaneseq
        %v1075 = vshrl.u32 %v1074, 7
        %v1076 = vsub.s32 6, %v1075
        %v1077 = vrot.slane %v297, %v1076
        %v1078 = vlaneseq
        %v1079 = vshrl.u32 %v1078, 7
        %v1080 = vsub.s32 6, %v1079
        %v1081 = vrot.slane %v298, %v1080
        %v1082 = vlaneseq
        %v1083 = vshrl.u32 %v1082, 7
        %v1084 = vsub.s32 6, %v1083
        %v1085 = vrot.slane %v299, %v1084
        %v1086 = vlaneseq
        %v1087 = vshrl.u32 %v1086, 7
        %v1088 = vsub.s32 6, %v1087
        %v1089 = vrot.slane %v300, %v1088
        %v1090 = vlaneseq
        %v1091 = vshrl.u32 %v1090, 7
        %v1092 = vsub.s32 6, %v1091
        %v1093 = vrot.slane %v301, %v1092
        %v1094 = vlaneseq
        %v1095 = vshrl.u32 %v1094, 7
        %v1096 = vsub.s32 6, %v1095
        %v1097 = vrot.slane %v302, %v1096
        %v1098 = vlaneseq
        %v1099 = vshrl.u32 %v1098, 7
        %v1100 = vsub.s32 6, %v1099
        %v1101 = vrot.slane %v303, %v1100
        %v1102 = vlaneseq
        %v1103 = vshrl.u32 %v1102, 7
        %v1104 = vsub.s32 6, %v1103
        %v1105 = vrot.slane %v304, %v1104
        %v1106 = vmul.f32 %v1040, %v1045
        %v1107 = vmul.f32 %v1039, %v1049
        %v1108 = vmul.f32 %v1038, %v1053
        %v1109 = vmul.f32 %v1037, %v1057
        %v1110 = vmul.f32 %v1036, %v1061
        %v1111 = vmul.f32 %v1035, %v1065
        %v1112 = vmul.f32 %v1034, %v1069
        %v1113 = vmul.f32 %v1033, %v1073
        %v1114 = vmul.f32 %v1032, %v1077
        %v1115 = vmul.f32 %v1031, %v1081
        %v1116 = vmul.f32 %v1030, %v1085
        %v1117 = vmul.f32 %v1029, %v1089
        %v1118 = vmul.f32 %v1028, %v1093
        %v1119 = vmul.f32 %v1027, %v1097
        %v1120 = vmul.f32 %v1026, %v1101
        %v1121 = vmul.f32 %v1041, %v1105
        %1122 = vrot.lane.b32.xlu0 %v281, 112
        %v1123 = vpop.permute.xlu0 %1122
        %1124 = vrot.lane.b32.xlu0 %v330, 112
        %v1125 = vpop.permute.xlu0 %1124
        %1126 = vrot.lane.b32.xlu0 %v282, 112
        %v1127 = vpop.permute.xlu0 %1126
        %1128 = vrot.lane.b32.xlu0 %v331, 112
        %v1129 = vpop.permute.xlu0 %1128
        %1130 = vrot.lane.b32.xlu0 %v283, 112
        %v1131 = vpop.permute.xlu0 %1130
        %1132 = vrot.lane.b32.xlu0 %v332, 112
        %v1133 = vpop.permute.xlu0 %1132
        %1134 = vrot.lane.b32.xlu0 %v284, 112
        %v1135 = vpop.permute.xlu0 %1134
        %1136 = vrot.lane.b32.xlu0 %v333, 112
        %v1137 = vpop.permute.xlu0 %1136
        %1138 = vrot.lane.b32.xlu0 %v285, 112
        %v1139 = vpop.permute.xlu0 %1138
        %1140 = vrot.lane.b32.xlu0 %v334, 112
        %v1141 = vpop.permute.xlu0 %1140
        %1142 = vrot.lane.b32.xlu0 %v286, 112
        %v1143 = vpop.permute.xlu0 %1142
        %1144 = vrot.lane.b32.xlu0 %v335, 112
        %v1145 = vpop.permute.xlu0 %1144
        %1146 = vrot.lane.b32.xlu0 %v287, 112
        %v1147 = vpop.permute.xlu0 %1146
        %1148 = vrot.lane.b32.xlu0 %v336, 112
        %v1149 = vpop.permute.xlu0 %1148
        %1150 = vrot.lane.b32.xlu0 %v288, 112
        %v1151 = vpop.permute.xlu0 %1150
        %1152 = vrot.lane.b32.xlu0 %v337, 112
        %v1153 = vpop.permute.xlu0 %1152
        %vm1154 = vcmp.lt.s32.totalorder %v379, 112
        %v1155 = vsel %vm1154, %v1151, %v1153
        %v1156 = vsel %vm1154, %v1149, %v1151
        %v1157 = vsel %vm1154, %v1147, %v1149
        %v1158 = vsel %vm1154, %v1145, %v1147
        %v1159 = vsel %vm1154, %v1143, %v1145
        %v1160 = vsel %vm1154, %v1141, %v1143
        %v1161 = vsel %vm1154, %v1139, %v1141
        %v1162 = vsel %vm1154, %v1137, %v1139
        %v1163 = vsel %vm1154, %v1135, %v1137
        %v1164 = vsel %vm1154, %v1133, %v1135
        %v1165 = vsel %vm1154, %v1131, %v1133
        %v1166 = vsel %vm1154, %v1129, %v1131
        %v1167 = vsel %vm1154, %v1127, %v1129
        %v1168 = vsel %vm1154, %v1125, %v1127
        %v1169 = vsel %vm1154, %v1123, %v1125
        %v1170 = vsel %vm1154, %v1153, %v1123
        %v1171 = vlaneseq
        %v1172 = vshrl.u32 %v1171, 7
        %v1173 = vsub.s32 7, %v1172
        %v1174 = vrot.slane %v289, %v1173
        %v1175 = vlaneseq
        %v1176 = vshrl.u32 %v1175, 7
        %v1177 = vsub.s32 7, %v1176
        %v1178 = vrot.slane %v290, %v1177
        %v1179 = vlaneseq
        %v1180 = vshrl.u32 %v1179, 7
        %v1181 = vsub.s32 7, %v1180
        %v1182 = vrot.slane %v291, %v1181
        %v1183 = vlaneseq
        %v1184 = vshrl.u32 %v1183, 7
        %v1185 = vsub.s32 7, %v1184
        %v1186 = vrot.slane %v292, %v1185
        %v1187 = vlaneseq
        %v1188 = vshrl.u32 %v1187, 7
        %v1189 = vsub.s32 7, %v1188
        %v1190 = vrot.slane %v293, %v1189
        %v1191 = vlaneseq
        %v1192 = vshrl.u32 %v1191, 7
        %v1193 = vsub.s32 7, %v1192
        %v1194 = vrot.slane %v294, %v1193
        %v1195 = vlaneseq
        %v1196 = vshrl.u32 %v1195, 7
        %v1197 = vsub.s32 7, %v1196
        %v1198 = vrot.slane %v295, %v1197
        %v1199 = vlaneseq
        %v1200 = vshrl.u32 %v1199, 7
        %v1201 = vsub.s32 7, %v1200
        %v1202 = vrot.slane %v296, %v1201
        %v1203 = vlaneseq
        %v1204 = vshrl.u32 %v1203, 7
        %v1205 = vsub.s32 7, %v1204
        %v1206 = vrot.slane %v297, %v1205
        %v1207 = vlaneseq
        %v1208 = vshrl.u32 %v1207, 7
        %v1209 = vsub.s32 7, %v1208
        %v1210 = vrot.slane %v298, %v1209
        %v1211 = vlaneseq
        %v1212 = vshrl.u32 %v1211, 7
        %v1213 = vsub.s32 7, %v1212
        %v1214 = vrot.slane %v299, %v1213
        %v1215 = vlaneseq
        %v1216 = vshrl.u32 %v1215, 7
        %v1217 = vsub.s32 7, %v1216
        %v1218 = vrot.slane %v300, %v1217
        %v1219 = vlaneseq
        %v1220 = vshrl.u32 %v1219, 7
        %v1221 = vsub.s32 7, %v1220
        %v1222 = vrot.slane %v301, %v1221
        %v1223 = vlaneseq
        %v1224 = vshrl.u32 %v1223, 7
        %v1225 = vsub.s32 7, %v1224
        %v1226 = vrot.slane %v302, %v1225
        %v1227 = vlaneseq
        %v1228 = vshrl.u32 %v1227, 7
        %v1229 = vsub.s32 7, %v1228
        %v1230 = vrot.slane %v303, %v1229
        %v1231 = vlaneseq
        %v1232 = vshrl.u32 %v1231, 7
        %v1233 = vsub.s32 7, %v1232
        %v1234 = vrot.slane %v304, %v1233
        %v1235 = vmul.f32 %v1169, %v1174
        %v1236 = vmul.f32 %v1168, %v1178
        %v1237 = vmul.f32 %v1167, %v1182
        %v1238 = vmul.f32 %v1166, %v1186
        %v1239 = vmul.f32 %v1165, %v1190
        %v1240 = vmul.f32 %v1164, %v1194
        %v1241 = vmul.f32 %v1163, %v1198
        %v1242 = vmul.f32 %v1162, %v1202
        %v1243 = vmul.f32 %v1161, %v1206
        %v1244 = vmul.f32 %v1160, %v1210
        %v1245 = vmul.f32 %v1159, %v1214
        %v1246 = vmul.f32 %v1158, %v1218
        %v1247 = vmul.f32 %v1157, %v1222
        %v1248 = vmul.f32 %v1156, %v1226
        %v1249 = vmul.f32 %v1155, %v1230
        %v1250 = vmul.f32 %v1170, %v1234
        %1251 = vrot.lane.b32.xlu0 %v281, 111
        %v1252 = vpop.permute.xlu0 %1251
        %1253 = vrot.lane.b32.xlu0 %v330, 111
        %v1254 = vpop.permute.xlu0 %1253
        %1255 = vrot.lane.b32.xlu0 %v282, 111
        %v1256 = vpop.permute.xlu0 %1255
        %1257 = vrot.lane.b32.xlu0 %v331, 111
        %v1258 = vpop.permute.xlu0 %1257
        %1259 = vrot.lane.b32.xlu0 %v283, 111
        %v1260 = vpop.permute.xlu0 %1259
        %1261 = vrot.lane.b32.xlu0 %v332, 111
        %v1262 = vpop.permute.xlu0 %1261
        %1263 = vrot.lane.b32.xlu0 %v284, 111
        %v1264 = vpop.permute.xlu0 %1263
        %1265 = vrot.lane.b32.xlu0 %v333, 111
        %v1266 = vpop.permute.xlu0 %1265
        %1267 = vrot.lane.b32.xlu0 %v285, 111
        %v1268 = vpop.permute.xlu0 %1267
        %1269 = vrot.lane.b32.xlu0 %v334, 111
        %v1270 = vpop.permute.xlu0 %1269
        %1271 = vrot.lane.b32.xlu0 %v286, 111
        %v1272 = vpop.permute.xlu0 %1271
        %1273 = vrot.lane.b32.xlu0 %v335, 111
        %v1274 = vpop.permute.xlu0 %1273
        %1275 = vrot.lane.b32.xlu0 %v287, 111
        %v1276 = vpop.permute.xlu0 %1275
        %1277 = vrot.lane.b32.xlu0 %v336, 111
        %v1278 = vpop.permute.xlu0 %1277
        %1279 = vrot.lane.b32.xlu0 %v288, 111
        %v1280 = vpop.permute.xlu0 %1279
        %1281 = vrot.lane.b32.xlu0 %v337, 111
        %v1282 = vpop.permute.xlu0 %1281
        %vm1283 = vcmp.lt.s32.totalorder %v379, 111
        %v1284 = vsel %vm1283, %v1280, %v1282
        %v1285 = vsel %vm1283, %v1278, %v1280
        %v1286 = vsel %vm1283, %v1276, %v1278
        %v1287 = vsel %vm1283, %v1274, %v1276
        %v1288 = vsel %vm1283, %v1272, %v1274
        %v1289 = vsel %vm1283, %v1270, %v1272
        %v1290 = vsel %vm1283, %v1268, %v1270
        %v1291 = vsel %vm1283, %v1266, %v1268
        %v1292 = vsel %vm1283, %v1264, %v1266
        %v1293 = vsel %vm1283, %v1262, %v1264
        %v1294 = vsel %vm1283, %v1260, %v1262
        %v1295 = vsel %vm1283, %v1258, %v1260
        %v1296 = vsel %vm1283, %v1256, %v1258
        %v1297 = vsel %vm1283, %v1254, %v1256
        %v1298 = vsel %vm1283, %v1252, %v1254
        %v1299 = vsel %vm1283, %v1282, %v1252
        %v1300 = vlaneseq
        %v1301 = vshrl.u32 %v1300, 7
        %v1302 = vsub.s32 0, %v1301
        %v1303 = vrot.slane %v305, %v1302
        %v1304 = vlaneseq
        %v1305 = vshrl.u32 %v1304, 7
        %v1306 = vsub.s32 0, %v1305
        %v1307 = vrot.slane %v306, %v1306
        %v1308 = vlaneseq
        %v1309 = vshrl.u32 %v1308, 7
        %v1310 = vsub.s32 0, %v1309
        %v1311 = vrot.slane %v307, %v1310
        %v1312 = vlaneseq
        %v1313 = vshrl.u32 %v1312, 7
        %v1314 = vsub.s32 0, %v1313
        %v1315 = vrot.slane %v308, %v1314
        %v1316 = vlaneseq
        %v1317 = vshrl.u32 %v1316, 7
        %v1318 = vsub.s32 0, %v1317
        %v1319 = vrot.slane %v309, %v1318
        %v1320 = vlaneseq
        %v1321 = vshrl.u32 %v1320, 7
        %v1322 = vsub.s32 0, %v1321
        %v1323 = vrot.slane %v310, %v1322
        %v1324 = vlaneseq
        %v1325 = vshrl.u32 %v1324, 7
        %v1326 = vsub.s32 0, %v1325
        %v1327 = vrot.slane %v311, %v1326
        %v1328 = vlaneseq
        %v1329 = vshrl.u32 %v1328, 7
        %v1330 = vsub.s32 0, %v1329
        %v1331 = vrot.slane %v312, %v1330
        %v1332 = vlaneseq
        %v1333 = vshrl.u32 %v1332, 7
        %v1334 = vsub.s32 0, %v1333
        %v1335 = vrot.slane %v313, %v1334
        %v1336 = vlaneseq
        %v1337 = vshrl.u32 %v1336, 7
        %v1338 = vsub.s32 0, %v1337
        %v1339 = vrot.slane %v314, %v1338
        %v1340 = vlaneseq
        %v1341 = vshrl.u32 %v1340, 7
        %v1342 = vsub.s32 0, %v1341
        %v1343 = vrot.slane %v315, %v1342
        %v1344 = vlaneseq
        %v1345 = vshrl.u32 %v1344, 7
        %v1346 = vsub.s32 0, %v1345
        %v1347 = vrot.slane %v316, %v1346
        %v1348 = vlaneseq
        %v1349 = vshrl.u32 %v1348, 7
        %v1350 = vsub.s32 0, %v1349
        %v1351 = vrot.slane %v317, %v1350
        %v1352 = vlaneseq
        %v1353 = vshrl.u32 %v1352, 7
        %v1354 = vsub.s32 0, %v1353
        %v1355 = vrot.slane %v318, %v1354
        %v1356 = vlaneseq
        %v1357 = vshrl.u32 %v1356, 7
        %v1358 = vsub.s32 0, %v1357
        %v1359 = vrot.slane %v319, %v1358
        %v1360 = vlaneseq
        %v1361 = vshrl.u32 %v1360, 7
        %v1362 = vsub.s32 0, %v1361
        %v1363 = vrot.slane %v320, %v1362
        %v1364 = vmul.f32 %v1298, %v1303
        %v1365 = vmul.f32 %v1297, %v1307
        %v1366 = vmul.f32 %v1296, %v1311
        %v1367 = vmul.f32 %v1295, %v1315
        %v1368 = vmul.f32 %v1294, %v1319
        %v1369 = vmul.f32 %v1293, %v1323
        %v1370 = vmul.f32 %v1292, %v1327
        %v1371 = vmul.f32 %v1291, %v1331
        %v1372 = vmul.f32 %v1290, %v1335
        %v1373 = vmul.f32 %v1289, %v1339
        %v1374 = vmul.f32 %v1288, %v1343
        %v1375 = vmul.f32 %v1287, %v1347
        %v1376 = vmul.f32 %v1286, %v1351
        %v1377 = vmul.f32 %v1285, %v1355
        %v1378 = vmul.f32 %v1284, %v1359
        %v1379 = vmul.f32 %v1299, %v1363
        %v1396 = vrot.slane %v590, 4
        %v1397 = vrot.slane %v591, 4
        %v1398 = vrot.slane %v592, 4
        %v1399 = vrot.slane %v593, 4
        %v1400 = vrot.slane %v594, 4
        %v1401 = vrot.slane %v595, 4
        %v1402 = vrot.slane %v596, 4
        %v1403 = vrot.slane %v597, 4
        %v1404 = vrot.slane %v598, 4
        %v1405 = vrot.slane %v599, 4
        %v1406 = vrot.slane %v600, 4
        %v1407 = vrot.slane %v601, 4
        %v1408 = vrot.slane %v602, 4
        %v1409 = vrot.slane %v603, 4
        %v1410 = vrot.slane %v604, 4
        %v1411 = vrot.slane %v605, 4
        %v1444 = vrot.slane %v848, 4
        %v1445 = vrot.slane %v849, 4
        %v1446 = vrot.slane %v850, 4
        %v1447 = vrot.slane %v851, 4
        %v1448 = vrot.slane %v852, 4
        %v1449 = vrot.slane %v853, 4
        %v1450 = vrot.slane %v854, 4
        %v1451 = vrot.slane %v855, 4
        %v1452 = vrot.slane %v856, 4
        %v1453 = vrot.slane %v857, 4
        %v1454 = vrot.slane %v858, 4
        %v1455 = vrot.slane %v859, 4
        %v1456 = vrot.slane %v860, 4
        %v1457 = vrot.slane %v861, 4
        %v1458 = vrot.slane %v862, 4
        %v1459 = vrot.slane %v863, 4
        %v1492 = vrot.slane %v977, 4
        %v1493 = vrot.slane %v978, 4
        %v1494 = vrot.slane %v979, 4
        %v1495 = vrot.slane %v980, 4
        %v1496 = vrot.slane %v981, 4
        %v1497 = vrot.slane %v982, 4
        %v1498 = vrot.slane %v983, 4
        %v1499 = vrot.slane %v984, 4
        %v1500 = vrot.slane %v985, 4
        %v1501 = vrot.slane %v986, 4
        %v1502 = vrot.slane %v987, 4
        %v1503 = vrot.slane %v988, 4
        %v1504 = vrot.slane %v989, 4
        %v1505 = vrot.slane %v990, 4
        %v1506 = vrot.slane %v991, 4
        %v1507 = vrot.slane %v992, 4
        %v1540 = vrot.slane %v1235, 4
        %v1541 = vrot.slane %v1236, 4
        %v1542 = vrot.slane %v1237, 4
        %v1543 = vrot.slane %v1238, 4
        %v1544 = vrot.slane %v1239, 4
        %v1545 = vrot.slane %v1240, 4
        %v1546 = vrot.slane %v1241, 4
        %v1547 = vrot.slane %v1242, 4
        %v1548 = vrot.slane %v1243, 4
        %v1549 = vrot.slane %v1244, 4
        %v1550 = vrot.slane %v1245, 4
        %v1551 = vrot.slane %v1246, 4
        %v1552 = vrot.slane %v1247, 4
        %v1553 = vrot.slane %v1248, 4
        %v1554 = vrot.slane %v1249, 4
        %v1555 = vrot.slane %v1250, 4
        %vm1572 = vcmask 1043456
        %v1573 = vsel %vm1572, %v461, %v1396
        %v1574 = vsel %vm1572, %v462, %v1397
        %v1575 = vsel %vm1572, %v463, %v1398
        %v1576 = vsel %vm1572, %v464, %v1399
        %v1577 = vsel %vm1572, %v465, %v1400
        %v1578 = vsel %vm1572, %v466, %v1401
        %v1579 = vsel %vm1572, %v467, %v1402
        %v1580 = vsel %vm1572, %v468, %v1403
        %v1581 = vsel %vm1572, %v469, %v1404
        %v1582 = vsel %vm1572, %v470, %v1405
        %v1583 = vsel %vm1572, %v471, %v1406
        %v1584 = vsel %vm1572, %v472, %v1407
        %v1585 = vsel %vm1572, %v473, %v1408
        %v1586 = vsel %vm1572, %v474, %v1409
        %v1587 = vsel %vm1572, %v475, %v1410
        %v1588 = vsel %vm1572, %v476, %v1411
        %v1589 = vsel %vm1572, %v719, %v1444
        %v1590 = vsel %vm1572, %v720, %v1445
        %v1591 = vsel %vm1572, %v721, %v1446
        %v1592 = vsel %vm1572, %v722, %v1447
        %v1593 = vsel %vm1572, %v723, %v1448
        %v1594 = vsel %vm1572, %v724, %v1449
        %v1595 = vsel %vm1572, %v725, %v1450
        %v1596 = vsel %vm1572, %v726, %v1451
        %v1597 = vsel %vm1572, %v727, %v1452
        %v1598 = vsel %vm1572, %v728, %v1453
        %v1599 = vsel %vm1572, %v729, %v1454
        %v1600 = vsel %vm1572, %v730, %v1455
        %v1601 = vsel %vm1572, %v731, %v1456
        %v1602 = vsel %vm1572, %v732, %v1457
        %v1603 = vsel %vm1572, %v733, %v1458
        %v1604 = vsel %vm1572, %v734, %v1459
        %v1605 = vsel %vm1572, %v281, %v1492
        %v1606 = vsel %vm1572, %v330, %v1493
        %v1607 = vsel %vm1572, %v282, %v1494
        %v1608 = vsel %vm1572, %v331, %v1495
        %v1609 = vsel %vm1572, %v283, %v1496
        %v1610 = vsel %vm1572, %v332, %v1497
        %v1611 = vsel %vm1572, %v284, %v1498
        %v1612 = vsel %vm1572, %v333, %v1499
        %v1613 = vsel %vm1572, %v285, %v1500
        %v1614 = vsel %vm1572, %v334, %v1501
        %v1615 = vsel %vm1572, %v286, %v1502
        %v1616 = vsel %vm1572, %v335, %v1503
        %v1617 = vsel %vm1572, %v287, %v1504
        %v1618 = vsel %vm1572, %v336, %v1505
        %v1619 = vsel %vm1572, %v288, %v1506
        %v1620 = vsel %vm1572, %v337, %v1507
        %v1621 = vsel %vm1572, %v1106, %v1540
        %v1622 = vsel %vm1572, %v1107, %v1541
        %v1623 = vsel %vm1572, %v1108, %v1542
        %v1624 = vsel %vm1572, %v1109, %v1543
        %v1625 = vsel %vm1572, %v1110, %v1544
        %v1626 = vsel %vm1572, %v1111, %v1545
        %v1627 = vsel %vm1572, %v1112, %v1546
        %v1628 = vsel %vm1572, %v1113, %v1547
        %v1629 = vsel %vm1572, %v1114, %v1548
        %v1630 = vsel %vm1572, %v1115, %v1549
        %v1631 = vsel %vm1572, %v1116, %v1550
        %v1632 = vsel %vm1572, %v1117, %v1551
        %v1633 = vsel %vm1572, %v1118, %v1552
        %v1634 = vsel %vm1572, %v1119, %v1553
        %v1635 = vsel %vm1572, %v1120, %v1554
        %v1636 = vsel %vm1572, %v1121, %v1555
        %v1637 = vpack.c.bf16 %v1589, %v1573
        %v1638 = vpack.c.bf16 %v1590, %v1574
        %v1639 = vpack.c.bf16 %v1591, %v1575
        %v1640 = vpack.c.bf16 %v1592, %v1576
        %v1641 = vpack.c.bf16 %v1593, %v1577
        %v1642 = vpack.c.bf16 %v1594, %v1578
        %v1643 = vpack.c.bf16 %v1595, %v1579
        %v1644 = vpack.c.bf16 %v1596, %v1580
        %v1645 = vpack.c.bf16 %v1597, %v1581
        %v1646 = vpack.c.bf16 %v1598, %v1582
        %v1647 = vpack.c.bf16 %v1599, %v1583
        %v1648 = vpack.c.bf16 %v1600, %v1584
        %v1649 = vpack.c.bf16 %v1601, %v1585
        %v1650 = vpack.c.bf16 %v1602, %v1586
        %v1651 = vpack.c.bf16 %v1603, %v1587
        %v1652 = vpack.c.bf16 %v1604, %v1588
        %v1653 = vpack.c.bf16 %v1621, %v1605
        %v1654 = vpack.c.bf16 %v1622, %v1606
        %v1655 = vpack.c.bf16 %v1623, %v1607
        %v1656 = vpack.c.bf16 %v1624, %v1608
        %v1657 = vpack.c.bf16 %v1625, %v1609
        %v1658 = vpack.c.bf16 %v1626, %v1610
        %v1659 = vpack.c.bf16 %v1627, %v1611
        %v1660 = vpack.c.bf16 %v1628, %v1612
        %v1661 = vpack.c.bf16 %v1629, %v1613
        %v1662 = vpack.c.bf16 %v1630, %v1614
        %v1663 = vpack.c.bf16 %v1631, %v1615
        %v1664 = vpack.c.bf16 %v1632, %v1616
        %v1665 = vpack.c.bf16 %v1633, %v1617
        %v1666 = vpack.c.bf16 %v1634, %v1618
        %v1667 = vpack.c.bf16 %v1635, %v1619
        %v1668 = vpack.c.bf16 %v1636, %v1620
        %v1669 = vpack.c.bf16 %v1364, %v1364
        %v1670 = vpack.c.bf16 %v1365, %v1365
        %v1671 = vpack.c.bf16 %v1366, %v1366
        %v1672 = vpack.c.bf16 %v1367, %v1367
        %v1673 = vpack.c.bf16 %v1368, %v1368
        %v1674 = vpack.c.bf16 %v1369, %v1369
        %v1675 = vpack.c.bf16 %v1370, %v1370
        %v1676 = vpack.c.bf16 %v1371, %v1371
        %v1677 = vpack.c.bf16 %v1372, %v1372
        %v1678 = vpack.c.bf16 %v1373, %v1373
        %v1679 = vpack.c.bf16 %v1374, %v1374
        %v1680 = vpack.c.bf16 %v1375, %v1375
        %v1681 = vpack.c.bf16 %v1376, %v1376
        %v1682 = vpack.c.bf16 %v1377, %v1377
        %v1683 = vpack.c.bf16 %v1378, %v1378
        %v1684 = vpack.c.bf16 %v1379, %v1379
        %vm1685 = vcmask 293888
        %v1687 = vsel %vm1685, %v321, 0
        %vm1689 = vcmask 1041408
        %v1691 = vsel %vm1689, %v1669, 0
        %v1694 = vsel %vm1689, %v1670, 0
        %v1697 = vsel %vm1689, %v1671, 0
        %v1700 = vsel %vm1689, %v1672, 0
        %v1703 = vsel %vm1689, %v1673, 0
        %v1706 = vsel %vm1689, %v1674, 0
        %v1709 = vsel %vm1689, %v1675, 0
        %v1712 = vsel %vm1689, %v1676, 0
        %v1715 = vsel %vm1689, %v1677, 0
        %v1718 = vsel %vm1689, %v1678, 0
        %v1721 = vsel %vm1689, %v1679, 0
        %v1724 = vsel %vm1689, %v1680, 0
        %v1727 = vsel %vm1689, %v1681, 0
        %v1730 = vsel %vm1689, %v1682, 0
        %v1733 = vsel %vm1689, %v1683, 0
        %v1736 = vsel %vm1689, %v1684, 0
        %1738 = vmatprep.subr.bf16.mxu0 0
        %1739 = vmatpush1.bf16.msra.mxu0 0
        %1740 = vmatprep.subr.bf16.mxu0 0
        %1741 = vmatpush1.bf16.msra.mxu0 0
        %1742 = vmatprep.subr.bf16.mxu0 0
        %1743 = vmatpush1.bf16.msra.mxu0 0
        %1744 = vmatprep.subr.bf16.mxu0 0
        %1745 = vmatpush1.bf16.msra.mxu0 0
        %1746 = vmatprep.subr.bf16.mxu0 0
        %1747 = vmatpush1.bf16.msra.mxu0 0
        %1748 = vmatprep.subr.bf16.mxu0 %v1694
        %1749 = vmatpush1.bf16.msra.mxu0 %v1691
        %1750 = vmatprep.subr.bf16.mxu0 %v1654
        %1751 = vmatpush1.bf16.msra.mxu0 %v1653
        %1752 = vmatprep.subr.bf16.mxu0 %v1638
        %1753 = vmatpush1.bf16.msra.mxu0 %v1637
        %1754 = vmatprep.subr.bf16.mxu0 0
        %1755 = vmatpush2.bf16.msra.mxu0 0
        %1756 = vmatprep.subr.bf16.mxu0 0
        %1757 = vmatpush2.bf16.msra.mxu0 0
        %1758 = vmatprep.subr.bf16.mxu0 0
        %1759 = vmatpush2.bf16.msra.mxu0 0
        %1760 = vmatprep.subr.bf16.mxu0 0
        %1761 = vmatpush2.bf16.msra.mxu0 0
        %1762 = vmatprep.subr.bf16.mxu0 0
        %1763 = vmatpush2.bf16.msra.mxu0 0
        %1764 = vmatprep.subr.bf16.mxu0 0
        %1765 = vmatpush2.bf16.msra.mxu0 0
        %1766 = vmatprep.subr.bf16.mxu0 0
        %1767 = vmatpush2.bf16.msra.mxu0 0
        %1768 = vmatprep.subr.bf16.mxu0 0
        %1769 = vmatpush2.bf16.msra.mxu0 0
        %1770 = vmatprep.mubr.bf16.mxu0 0
        %1771 = vmatmul.mubr.bf16.gmra.mxu0 %v1687
        %v1772 = vpop.f32.mrf.mxu0
        %v1773 = vadd.f32 0.0, %v1772
        %v1774 = vpop.f32.mrf.mxu0
        %v1775 = vadd.f32 0.0, %v1774
        %v1776 = vpop.f32.mrf.mxu0
        %v1777 = vpop.f32.mrf.mxu0
        %1778 = vdwg.mxu0
        %1779 = vmatprep.subr.bf16.mxu0 0
        %1780 = vmatpush1.bf16.msra.mxu0 0
        %1781 = vmatprep.subr.bf16.mxu0 0
        %1782 = vmatpush1.bf16.msra.mxu0 0
        %1783 = vmatprep.subr.bf16.mxu0 0
        %1784 = vmatpush1.bf16.msra.mxu0 0
        %1785 = vmatprep.subr.bf16.mxu0 0
        %1786 = vmatpush1.bf16.msra.mxu0 0
        %1787 = vmatprep.subr.bf16.mxu0 0
        %1788 = vmatpush1.bf16.msra.mxu0 0
        %1789 = vmatprep.subr.bf16.mxu0 %v1700
        %1790 = vmatpush1.bf16.msra.mxu0 %v1697
        %1791 = vmatprep.subr.bf16.mxu0 %v1656
        %1792 = vmatpush1.bf16.msra.mxu0 %v1655
        %1793 = vmatprep.subr.bf16.mxu0 %v1640
        %1794 = vmatpush1.bf16.msra.mxu0 %v1639
        %1795 = vmatprep.subr.bf16.mxu0 0
        %1796 = vmatpush2.bf16.msra.mxu0 0
        %1797 = vmatprep.subr.bf16.mxu0 0
        %1798 = vmatpush2.bf16.msra.mxu0 0
        %1799 = vmatprep.subr.bf16.mxu0 0
        %1800 = vmatpush2.bf16.msra.mxu0 0
        %1801 = vmatprep.subr.bf16.mxu0 0
        %1802 = vmatpush2.bf16.msra.mxu0 0
        %1803 = vmatprep.subr.bf16.mxu0 0
        %1804 = vmatpush2.bf16.msra.mxu0 0
        %1805 = vmatprep.subr.bf16.mxu0 0
        %1806 = vmatpush2.bf16.msra.mxu0 0
        %1807 = vmatprep.subr.bf16.mxu0 0
        %1808 = vmatpush2.bf16.msra.mxu0 0
        %1809 = vmatprep.subr.bf16.mxu0 0
        %1810 = vmatpush2.bf16.msra.mxu0 0
        %1811 = vmatprep.mubr.bf16.mxu0 0
        %1812 = vmatmul.mubr.bf16.gmra.mxu0 %v1687
        %v1813 = vpop.f32.mrf.mxu0
        %v1814 = vadd.f32 0.0, %v1813
        %v1815 = vpop.f32.mrf.mxu0
        %v1816 = vadd.f32 0.0, %v1815
        %v1817 = vpop.f32.mrf.mxu0
        %v1818 = vpop.f32.mrf.mxu0
        %1819 = vdwg.mxu0
        %1820 = vmatprep.subr.bf16.mxu0 0
        %1821 = vmatpush1.bf16.msra.mxu0 0
        %1822 = vmatprep.subr.bf16.mxu0 0
        %1823 = vmatpush1.bf16.msra.mxu0 0
        %1824 = vmatprep.subr.bf16.mxu0 0
        %1825 = vmatpush1.bf16.msra.mxu0 0
        %1826 = vmatprep.subr.bf16.mxu0 0
        %1827 = vmatpush1.bf16.msra.mxu0 0
        %1828 = vmatprep.subr.bf16.mxu0 0
        %1829 = vmatpush1.bf16.msra.mxu0 0
        %1830 = vmatprep.subr.bf16.mxu0 %v1706
        %1831 = vmatpush1.bf16.msra.mxu0 %v1703
        %1832 = vmatprep.subr.bf16.mxu0 %v1658
        %1833 = vmatpush1.bf16.msra.mxu0 %v1657
        %1834 = vmatprep.subr.bf16.mxu0 %v1642
        %1835 = vmatpush1.bf16.msra.mxu0 %v1641
        %1836 = vmatprep.subr.bf16.mxu0 0
        %1837 = vmatpush2.bf16.msra.mxu0 0
        %1838 = vmatprep.subr.bf16.mxu0 0
        %1839 = vmatpush2.bf16.msra.mxu0 0
        %1840 = vmatprep.subr.bf16.mxu0 0
        %1841 = vmatpush2.bf16.msra.mxu0 0
        %1842 = vmatprep.subr.bf16.mxu0 0
        %1843 = vmatpush2.bf16.msra.mxu0 0
        %1844 = vmatprep.subr.bf16.mxu0 0
        %1845 = vmatpush2.bf16.msra.mxu0 0
        %1846 = vmatprep.subr.bf16.mxu0 0
        %1847 = vmatpush2.bf16.msra.mxu0 0
        %1848 = vmatprep.subr.bf16.mxu0 0
        %1849 = vmatpush2.bf16.msra.mxu0 0
        %1850 = vmatprep.subr.bf16.mxu0 0
        %1851 = vmatpush2.bf16.msra.mxu0 0
        %1852 = vmatprep.mubr.bf16.mxu0 0
        %1853 = vmatmul.mubr.bf16.gmra.mxu0 %v1687
        %v1854 = vpop.f32.mrf.mxu0
        %v1855 = vadd.f32 0.0, %v1854
        %v1856 = vpop.f32.mrf.mxu0
        %v1857 = vadd.f32 0.0, %v1856
        %v1858 = vpop.f32.mrf.mxu0
        %v1859 = vpop.f32.mrf.mxu0
        %1860 = vdwg.mxu0
        %1861 = vmatprep.subr.bf16.mxu0 0
        %1862 = vmatpush1.bf16.msra.mxu0 0
        %1863 = vmatprep.subr.bf16.mxu0 0
        %1864 = vmatpush1.bf16.msra.mxu0 0
        %1865 = vmatprep.subr.bf16.mxu0 0
        %1866 = vmatpush1.bf16.msra.mxu0 0
        %1867 = vmatprep.subr.bf16.mxu0 0
        %1868 = vmatpush1.bf16.msra.mxu0 0
        %1869 = vmatprep.subr.bf16.mxu0 0
        %1870 = vmatpush1.bf16.msra.mxu0 0
        %1871 = vmatprep.subr.bf16.mxu0 %v1712
        %1872 = vmatpush1.bf16.msra.mxu0 %v1709
        %1873 = vmatprep.subr.bf16.mxu0 %v1660
        %1874 = vmatpush1.bf16.msra.mxu0 %v1659
        %1875 = vmatprep.subr.bf16.mxu0 %v1644
        %1876 = vmatpush1.bf16.msra.mxu0 %v1643
        %1877 = vmatprep.subr.bf16.mxu0 0
        %1878 = vmatpush2.bf16.msra.mxu0 0
        %1879 = vmatprep.subr.bf16.mxu0 0
        %1880 = vmatpush2.bf16.msra.mxu0 0
        %1881 = vmatprep.subr.bf16.mxu0 0
        %1882 = vmatpush2.bf16.msra.mxu0 0
        %1883 = vmatprep.subr.bf16.mxu0 0
        %1884 = vmatpush2.bf16.msra.mxu0 0
        %1885 = vmatprep.subr.bf16.mxu0 0
        %1886 = vmatpush2.bf16.msra.mxu0 0
        %1887 = vmatprep.subr.bf16.mxu0 0
        %1888 = vmatpush2.bf16.msra.mxu0 0
        %1889 = vmatprep.subr.bf16.mxu0 0
        %1890 = vmatpush2.bf16.msra.mxu0 0
        %1891 = vmatprep.subr.bf16.mxu0 0
        %1892 = vmatpush2.bf16.msra.mxu0 0
        %1893 = vmatprep.mubr.bf16.mxu0 0
        %1894 = vmatmul.mubr.bf16.gmra.mxu0 %v1687
        %v1895 = vpop.f32.mrf.mxu0
        %v1896 = vadd.f32 0.0, %v1895
        %v1897 = vpop.f32.mrf.mxu0
        %v1898 = vadd.f32 0.0, %v1897
        %v1899 = vpop.f32.mrf.mxu0
        %v1900 = vpop.f32.mrf.mxu0
        %1901 = vdwg.mxu0
        %1902 = vmatprep.subr.bf16.mxu0 0
        %1903 = vmatpush1.bf16.msra.mxu0 0
        %1904 = vmatprep.subr.bf16.mxu0 0
        %1905 = vmatpush1.bf16.msra.mxu0 0
        %1906 = vmatprep.subr.bf16.mxu0 0
        %1907 = vmatpush1.bf16.msra.mxu0 0
        %1908 = vmatprep.subr.bf16.mxu0 0
        %1909 = vmatpush1.bf16.msra.mxu0 0
        %1910 = vmatprep.subr.bf16.mxu0 0
        %1911 = vmatpush1.bf16.msra.mxu0 0
        %1912 = vmatprep.subr.bf16.mxu0 %v1718
        %1913 = vmatpush1.bf16.msra.mxu0 %v1715
        %1914 = vmatprep.subr.bf16.mxu0 %v1662
        %1915 = vmatpush1.bf16.msra.mxu0 %v1661
        %1916 = vmatprep.subr.bf16.mxu0 %v1646
        %1917 = vmatpush1.bf16.msra.mxu0 %v1645
        %1918 = vmatprep.subr.bf16.mxu0 0
        %1919 = vmatpush2.bf16.msra.mxu0 0
        %1920 = vmatprep.subr.bf16.mxu0 0
        %1921 = vmatpush2.bf16.msra.mxu0 0
        %1922 = vmatprep.subr.bf16.mxu0 0
        %1923 = vmatpush2.bf16.msra.mxu0 0
        %1924 = vmatprep.subr.bf16.mxu0 0
        %1925 = vmatpush2.bf16.msra.mxu0 0
        %1926 = vmatprep.subr.bf16.mxu0 0
        %1927 = vmatpush2.bf16.msra.mxu0 0
        %1928 = vmatprep.subr.bf16.mxu0 0
        %1929 = vmatpush2.bf16.msra.mxu0 0
        %1930 = vmatprep.subr.bf16.mxu0 0
        %1931 = vmatpush2.bf16.msra.mxu0 0
        %1932 = vmatprep.subr.bf16.mxu0 0
        %1933 = vmatpush2.bf16.msra.mxu0 0
        %1934 = vmatprep.mubr.bf16.mxu0 0
        %1935 = vmatmul.mubr.bf16.gmra.mxu0 %v1687
        %v1936 = vpop.f32.mrf.mxu0
        %v1937 = vadd.f32 0.0, %v1936
        %v1938 = vpop.f32.mrf.mxu0
        %v1939 = vadd.f32 0.0, %v1938
        %v1940 = vpop.f32.mrf.mxu0
        %v1941 = vpop.f32.mrf.mxu0
        %1942 = vdwg.mxu0
        %1943 = vmatprep.subr.bf16.mxu0 0
        %1944 = vmatpush1.bf16.msra.mxu0 0
        %1945 = vmatprep.subr.bf16.mxu0 0
        %1946 = vmatpush1.bf16.msra.mxu0 0
        %1947 = vmatprep.subr.bf16.mxu0 0
        %1948 = vmatpush1.bf16.msra.mxu0 0
        %1949 = vmatprep.subr.bf16.mxu0 0
        %1950 = vmatpush1.bf16.msra.mxu0 0
        %1951 = vmatprep.subr.bf16.mxu0 0
        %1952 = vmatpush1.bf16.msra.mxu0 0
        %1953 = vmatprep.subr.bf16.mxu0 %v1724
        %1954 = vmatpush1.bf16.msra.mxu0 %v1721
        %1955 = vmatprep.subr.bf16.mxu0 %v1664
        %1956 = vmatpush1.bf16.msra.mxu0 %v1663
        %1957 = vmatprep.subr.bf16.mxu0 %v1648
        %1958 = vmatpush1.bf16.msra.mxu0 %v1647
        %1959 = vmatprep.subr.bf16.mxu0 0
        %1960 = vmatpush2.bf16.msra.mxu0 0
        %1961 = vmatprep.subr.bf16.mxu0 0
        %1962 = vmatpush2.bf16.msra.mxu0 0
        %1963 = vmatprep.subr.bf16.mxu0 0
        %1964 = vmatpush2.bf16.msra.mxu0 0
        %1965 = vmatprep.subr.bf16.mxu0 0
        %1966 = vmatpush2.bf16.msra.mxu0 0
        %1967 = vmatprep.subr.bf16.mxu0 0
        %1968 = vmatpush2.bf16.msra.mxu0 0
        %1969 = vmatprep.subr.bf16.mxu0 0
        %1970 = vmatpush2.bf16.msra.mxu0 0
        %1971 = vmatprep.subr.bf16.mxu0 0
        %1972 = vmatpush2.bf16.msra.mxu0 0
        %1973 = vmatprep.subr.bf16.mxu0 0
        %1974 = vmatpush2.bf16.msra.mxu0 0
        %1975 = vmatprep.mubr.bf16.mxu0 0
        %1976 = vmatmul.mubr.bf16.gmra.mxu0 %v1687
        %v1977 = vpop.f32.mrf.mxu0
        %v1978 = vadd.f32 0.0, %v1977
        %v1979 = vpop.f32.mrf.mxu0
        %v1980 = vadd.f32 0.0, %v1979
        %v1981 = vpop.f32.mrf.mxu0
        %v1982 = vpop.f32.mrf.mxu0
        %1983 = vdwg.mxu0
        %1984 = vmatprep.subr.bf16.mxu0 0
        %1985 = vmatpush1.bf16.msra.mxu0 0
        %1986 = vmatprep.subr.bf16.mxu0 0
        %1987 = vmatpush1.bf16.msra.mxu0 0
        %1988 = vmatprep.subr.bf16.mxu0 0
        %1989 = vmatpush1.bf16.msra.mxu0 0
        %1990 = vmatprep.subr.bf16.mxu0 0
        %1991 = vmatpush1.bf16.msra.mxu0 0
        %1992 = vmatprep.subr.bf16.mxu0 0
        %1993 = vmatpush1.bf16.msra.mxu0 0
        %1994 = vmatprep.subr.bf16.mxu0 %v1730
        %1995 = vmatpush1.bf16.msra.mxu0 %v1727
        %1996 = vmatprep.subr.bf16.mxu0 %v1666
        %1997 = vmatpush1.bf16.msra.mxu0 %v1665
        %1998 = vmatprep.subr.bf16.mxu0 %v1650
        %1999 = vmatpush1.bf16.msra.mxu0 %v1649
        %2000 = vmatprep.subr.bf16.mxu0 0
        %2001 = vmatpush2.bf16.msra.mxu0 0
        %2002 = vmatprep.subr.bf16.mxu0 0
        %2003 = vmatpush2.bf16.msra.mxu0 0
        %2004 = vmatprep.subr.bf16.mxu0 0
        %2005 = vmatpush2.bf16.msra.mxu0 0
        %2006 = vmatprep.subr.bf16.mxu0 0
        %2007 = vmatpush2.bf16.msra.mxu0 0
        %2008 = vmatprep.subr.bf16.mxu0 0
        %2009 = vmatpush2.bf16.msra.mxu0 0
        %2010 = vmatprep.subr.bf16.mxu0 0
        %2011 = vmatpush2.bf16.msra.mxu0 0
        %2012 = vmatprep.subr.bf16.mxu0 0
        %2013 = vmatpush2.bf16.msra.mxu0 0
        %2014 = vmatprep.subr.bf16.mxu0 0
        %2015 = vmatpush2.bf16.msra.mxu0 0
        %2016 = vmatprep.mubr.bf16.mxu0 0
        %2017 = vmatmul.mubr.bf16.gmra.mxu0 %v1687
        %v2018 = vpop.f32.mrf.mxu0
        %v2019 = vadd.f32 0.0, %v2018
        %v2020 = vpop.f32.mrf.mxu0
        %v2021 = vadd.f32 0.0, %v2020
        %v2022 = vpop.f32.mrf.mxu0
        %v2023 = vpop.f32.mrf.mxu0
        %2024 = vdwg.mxu0
        %2025 = vmatprep.subr.bf16.mxu0 0
        %2026 = vmatpush1.bf16.msra.mxu0 0
        %2027 = vmatprep.subr.bf16.mxu0 0
        %2028 = vmatpush1.bf16.msra.mxu0 0
        %2029 = vmatprep.subr.bf16.mxu0 0
        %2030 = vmatpush1.bf16.msra.mxu0 0
        %2031 = vmatprep.subr.bf16.mxu0 0
        %2032 = vmatpush1.bf16.msra.mxu0 0
        %2033 = vmatprep.subr.bf16.mxu0 0
        %2034 = vmatpush1.bf16.msra.mxu0 0
        %2035 = vmatprep.subr.bf16.mxu0 %v1736
        %2036 = vmatpush1.bf16.msra.mxu0 %v1733
        %2037 = vmatprep.subr.bf16.mxu0 %v1668
        %2038 = vmatpush1.bf16.msra.mxu0 %v1667
        %2039 = vmatprep.subr.bf16.mxu0 %v1652
        %2040 = vmatpush1.bf16.msra.mxu0 %v1651
        %2041 = vmatprep.subr.bf16.mxu0 0
        %2042 = vmatpush2.bf16.msra.mxu0 0
        %2043 = vmatprep.subr.bf16.mxu0 0
        %2044 = vmatpush2.bf16.msra.mxu0 0
        %2045 = vmatprep.subr.bf16.mxu0 0
        %2046 = vmatpush2.bf16.msra.mxu0 0
        %2047 = vmatprep.subr.bf16.mxu0 0
        %2048 = vmatpush2.bf16.msra.mxu0 0
        %2049 = vmatprep.subr.bf16.mxu0 0
        %2050 = vmatpush2.bf16.msra.mxu0 0
        %2051 = vmatprep.subr.bf16.mxu0 0
        %2052 = vmatpush2.bf16.msra.mxu0 0
        %2053 = vmatprep.subr.bf16.mxu0 0
        %2054 = vmatpush2.bf16.msra.mxu0 0
        %2055 = vmatprep.subr.bf16.mxu0 0
        %2056 = vmatpush2.bf16.msra.mxu0 0
        %2057 = vmatprep.mubr.bf16.mxu0 0
        %2058 = vmatmul.mubr.bf16.gmra.mxu0 %v1687
        %v2059 = vpop.f32.mrf.mxu0
        %v2060 = vadd.f32 0.0, %v2059
        %v2061 = vpop.f32.mrf.mxu0
        %v2062 = vadd.f32 0.0, %v2061
        %v2063 = vpop.f32.mrf.mxu0
        %v2064 = vpop.f32.mrf.mxu0
        %2065 = vdwg.mxu0
        %v2066 = vpack.c.bf16 %v1773, %v1773
        %v2067 = vpack.c.bf16 %v1775, %v1775
        %v2068 = vpack.c.bf16 %v1814, %v1814
        %v2069 = vpack.c.bf16 %v1816, %v1816
        %v2070 = vpack.c.bf16 %v1855, %v1855
        %v2071 = vpack.c.bf16 %v1857, %v1857
        %v2072 = vpack.c.bf16 %v1896, %v1896
        %v2073 = vpack.c.bf16 %v1898, %v1898
        %v2074 = vpack.c.bf16 %v1937, %v1937
        %v2075 = vpack.c.bf16 %v1939, %v1939
        %v2076 = vpack.c.bf16 %v1978, %v1978
        %v2077 = vpack.c.bf16 %v1980, %v1980
        %v2078 = vpack.c.bf16 %v2019, %v2019
        %v2079 = vpack.c.bf16 %v2021, %v2021
        %v2080 = vpack.c.bf16 %v2060, %v2060
        %v2081 = vpack.c.bf16 %v2062, %v2062
        %v2098 = vunpack.c.l.b16 %v2066
        %v2099 = vunpack.c.l.b16 %v2067
        %v2100 = vunpack.c.l.b16 %v2068
        %v2101 = vunpack.c.l.b16 %v2069
        %v2102 = vunpack.c.l.b16 %v2070
        %v2103 = vunpack.c.l.b16 %v2071
        %v2104 = vunpack.c.l.b16 %v2072
        %v2105 = vunpack.c.l.b16 %v2073
        %v2106 = vunpack.c.l.b16 %v2074
        %v2107 = vunpack.c.l.b16 %v2075
        %v2108 = vunpack.c.l.b16 %v2076
        %v2109 = vunpack.c.l.b16 %v2077
        %v2110 = vunpack.c.l.b16 %v2078
        %v2111 = vunpack.c.l.b16 %v2079
        %v2112 = vunpack.c.l.b16 %v2080
        %v2113 = vunpack.c.l.b16 %v2081
        %v2114 = vpack.c.b16 %v2099, %v2098
        %v2115 = vpack.c.b16 %v2101, %v2100
        %v2116 = vpack.c.b16 %v2103, %v2102
        %v2117 = vpack.c.b16 %v2105, %v2104
        %v2118 = vpack.c.b16 %v2107, %v2106
        %v2119 = vpack.c.b16 %v2109, %v2108
        %v2120 = vpack.c.b16 %v2111, %v2110
        %v2121 = vpack.c.b16 %v2113, %v2112
        %2130 = vst [vmem:[%s261] sm:$0xff] %v2114
        %2131 = vst [vmem:[%s261 + $0x8] sm:$0xff] %v2115
        %2132 = vst [vmem:[%s261 + $0x10] sm:$0xff] %v2116
        %2133 = vst [vmem:[%s261 + $0x18] sm:$0xff] %v2117
        %2134 = vst [vmem:[%s261 + $0x20] sm:$0xff] %v2118
        %2135 = vst [vmem:[%s261 + $0x28] sm:$0xff] %v2119
        %2136 = vst [vmem:[%s261 + $0x30] sm:$0xff] %v2120
        %2137 = vst [vmem:[%s261 + $0x38] sm:$0xff] %v2121
        %v2138 = vadd.f32 %v1773, %v1775
        %v2139 = vadd.f32 %v2138, %v1814
        %v2140 = vadd.f32 %v2139, %v1816
        %v2141 = vadd.f32 %v2140, %v1855
        %v2142 = vadd.f32 %v2141, %v1857
        %v2143 = vadd.f32 %v2142, %v1896
        %v2144 = vadd.f32 %v2143, %v1898
        %v2145 = vadd.f32 %v2144, %v1937
        %v2146 = vadd.f32 %v2145, %v1939
        %v2147 = vadd.f32 %v2146, %v1978
        %v2148 = vadd.f32 %v2147, %v1980
        %v2149 = vadd.f32 %v2148, %v2019
        %v2150 = vadd.f32 %v2149, %v2021
        %v2151 = vadd.f32 %v2150, %v2060
        %v2152 = vadd.f32 %v2151, %v2062
        %2153 = vadd.xlane.f32.xlu0 %v2152
        %v2154 = vpop.xlane.xlu0 %2153
        %v2155 = vmul.f32 %v1773, %v1773
        %v2156 = vmul.f32 %v1775, %v1775
        %v2157 = vmul.f32 %v1814, %v1814
        %v2158 = vmul.f32 %v1816, %v1816
        %v2159 = vmul.f32 %v1855, %v1855
        %v2160 = vmul.f32 %v1857, %v1857
        %v2161 = vmul.f32 %v1896, %v1896
        %v2162 = vmul.f32 %v1898, %v1898
        %v2163 = vmul.f32 %v1937, %v1937
        %v2164 = vmul.f32 %v1939, %v1939
        %v2165 = vmul.f32 %v1978, %v1978
        %v2166 = vmul.f32 %v1980, %v1980
        %v2167 = vmul.f32 %v2019, %v2019
        %v2168 = vmul.f32 %v2021, %v2021
        %v2169 = vmul.f32 %v2060, %v2060
        %v2170 = vmul.f32 %v2062, %v2062
        %v2171 = vadd.f32 %v2155, %v2156
        %v2172 = vadd.f32 %v2171, %v2157
        %v2173 = vadd.f32 %v2172, %v2158
        %v2174 = vadd.f32 %v2173, %v2159
        %v2175 = vadd.f32 %v2174, %v2160
        %v2176 = vadd.f32 %v2175, %v2161
        %v2177 = vadd.f32 %v2176, %v2162
        %v2178 = vadd.f32 %v2177, %v2163
        %v2179 = vadd.f32 %v2178, %v2164
        %v2180 = vadd.f32 %v2179, %v2165
        %v2181 = vadd.f32 %v2180, %v2166
        %v2182 = vadd.f32 %v2181, %v2167
        %v2183 = vadd.f32 %v2182, %v2168
        %v2184 = vadd.f32 %v2183, %v2169
        %v2185 = vadd.f32 %v2184, %v2170
        %2186 = vadd.xlane.f32.xlu0 %v2185
        %v2187 = vpop.xlane.xlu0 %2186
        %vm2188 = vcmask 7168
        %v2189 = vsel %vm2188, %v2154, %v2187
        %vm2190 = vcmask 15360
        %2191 = vst.msk [vmem:[%s279] sm:$0xff] %vm2190, %v2189
        %s2192 = sand.u32 %s115, 1
        %s2193 = scalar_lea.sflag [#allocation4], %s2192
        %s2194 = sand.u32 %s115, 1
        %s2195 = smul.addr %s2194, 64
        %s2196 = scalar_lea.vmem [#allocation8], %s2195
        %p2197 = scmp.lt.s32.totalorder %s27, 1
        %s2198 = scalar_select %p2197, %s27, 1
        %p2199 = scmp.lt.s32.totalorder %s28, 0
        %s2200 = scalar_select %p2199, %s28, 0
        %s2201 = sadd.s32 %s2200, %s2198
        %s2202 = smul.addr %s2201, 8
        %s2203 = scalar_lea.vmem %s4, %s2202
        // Predicated region
        $region45: #{tpu_custom_call.1} parent=31 // pred_check
          %p2204 = pneg %p125
        $region46: #{tpu_custom_call.1} parent=31 // pred_check_branch
          %2206 = sbr.rel (%p2204) target = $region48
        $region47: #{tpu_custom_call.1} parent=31 // pred_region
          %s2207 = smul.u32 16, %s28
          %s2209 = ssub.s32 1024, 1024
          %2210 = vsyncadd %s2193, %s2209
          %s2211 = smul.addr %s27, 16
          %s2212 = sadd.s32 %s2207, %s2211
          %s2213 = smul.addr %s2212, 64
          %s2214 = scalar_lea.hbm %s3, %s2213
          %s2216 = sshll.u32 %s2196, 4
          %s2217 = int_to_ptr.vmem [resolvable:$true] %s2216
          %2219 = dma.vmem_to_hbm [thread:$0]  %s2217, 1024, %s2214, %s2193
        $region48: #{tpu_custom_call.1} parent=31 // pred_fallthru
          _
        // Predicated region
        $region49: #{tpu_custom_call.1} parent=31 // pred_check
          %p2220 = pneg %p153
        $region50: #{tpu_custom_call.1} parent=31 // pred_check_branch
          %2222 = sbr.rel (%p2220) target = $region52
        $region51: #{tpu_custom_call.1} parent=31 // pred_region
          _
        $region52: #{tpu_custom_call.1} parent=31 // pred_fallthru
          _
      $region32: #{tpu_custom_call.1} parent=5 // pred_fallthru
        _
      %p2223 = scmp.le.s32.totalorder 2, %s18
      // Predicated region
      $region53: #{tpu_custom_call.1} parent=5 // pred_check
        %p2224 = pneg %p2223
      $region54: #{tpu_custom_call.1} parent=5 // pred_check_branch
        %2226 = sbr.rel (%p2224) target = $region56
      $region55: #{tpu_custom_call.1} parent=5 // pred_region
        %s2227 = ssub.s32 %s18, 2
        // Predicated region
        $region57: #{tpu_custom_call.1} parent=55 // pred_check
          %p2228 = pneg %p131
        $region58: #{tpu_custom_call.1} parent=55 // pred_check_branch
          %2230 = sbr.rel (%p2228) target = $region60
        $region59: #{tpu_custom_call.1} parent=55 // pred_region
          %s2231 = sand.u32 %s116, 1
          %s2232 = scalar_lea.sflag [#allocation4], %s2231
          %s2233 = sand.u32 %s116, 1
          %s2234 = smul.addr %s2233, 64
          %s2235 = scalar_lea.vmem [#allocation8], %s2234
          %2236 = dma.done %s2232, 1024
        $region60: #{tpu_custom_call.1} parent=55 // pred_fallthru
          _
        // Predicated region
        $region61: #{tpu_custom_call.1} parent=55 // pred_check
          %p2237 = pneg %p159
        $region62: #{tpu_custom_call.1} parent=55 // pred_check_branch
          %2239 = sbr.rel (%p2237) target = $region64
        $region63: #{tpu_custom_call.1} parent=55 // pred_region
          %p2240 = scmp.lt.s32.totalorder %s29, 1
          %s2241 = scalar_select %p2240, %s29, 1
          %p2242 = scmp.lt.s32.totalorder %s30, 0
          %s2243 = scalar_select %p2242, %s30, 0
          %s2244 = sadd.s32 %s2243, %s2241
          %s2245 = smul.addr %s2244, 8
          %s2246 = scalar_lea.vmem %s4, %s2245
        $region64: #{tpu_custom_call.1} parent=55 // pred_fallthru
          _
      $region56: #{tpu_custom_call.1} parent=5 // pred_fallthru
        _
    $region6: #{tpu_custom_call.1} parent=1 // loop_footer
      %s22 = sadd.s32 1, %s18
    $region7: #{tpu_custom_call.1} parent=1 // loop_footer_branch
      %17 = sbr.rel target = $region3
    $region8: #{tpu_custom_call.1} parent=1 // loop_exit
      _
    %2247 = vsyncpa [#allocation3], 1
    %s2248 = scalar_lea.sflag [#allocation3], 1
    %2249 = vsyncpa %s2248, 1
    %2250 = vsyncpa [#allocation6], 1
    %s2251 = scalar_lea.sflag [#allocation6], 1
    %2252 = vsyncpa %s2251, 1
    %2253 = vsyncpa [#allocation4], 1
    %s2254 = scalar_lea.sflag [#allocation4], 1
    %2255 = vsyncpa %s2254, 1

</llo_original>
